<compile_context>
chip_gen: v6e
topology: v6e:2x2x1
jax: 0.10.0
libtpu: 0.0.40
codegen_flags: <defaults>
</compile_context>

<pallas_src>
import jax
import jax.numpy as jnp
from jax.experimental import pallas as pl
from jax.experimental.pallas import tpu as pltpu


# ---------------------------------------------------------------------------
# Fused Pallas kernel: entire TradeDiscriminator forward for one batch tile
# ---------------------------------------------------------------------------
def _fused_forward_kernel(x_ref, w1_ref, b1_ref, w2_ref, b2_ref, w3_ref, b3_ref,
                          wc1_ref, bc1_ref, wc2_ref, bc2_ref, o_ref,
                          pad1, pad2, pad3):
    TB, L, _ = x_ref.shape
    K = w1_ref.shape[0]
    L2 = pad3.shape[0] - 2
    L4, C3, H = wc1_ref.shape

    def leaky(v):
        return jnp.where(v > 0, v, 0.2 * v)

    # Zero the padded scratch buffers once; interior rows are fully
    # overwritten for every sample, only the boundary rows must stay zero.
    pad1[...] = jnp.zeros_like(pad1)
    pad2[...] = jnp.zeros_like(pad2)
    pad3[...] = jnp.zeros_like(pad3)

    for bi in range(TB):                            # static unroll, TB <= 8
        # --- Conv1d(C_in -> 64, k=3, s=1, p=1) + LeakyReLU -----------------
        pad1[pl.ds(1, L), :] = x_ref[bi].astype(jnp.float32)
        h = None
        for k in range(K):
            d = jnp.dot(pad1[pl.ds(k, L), :], w1_ref[k],
                        preferred_element_type=jnp.float32)
            h = d if h is None else h + d
        h = leaky(h + b1_ref[...])                  # (L, 64)

        # --- Conv1d(64 -> 128, k=3, s=2, p=1) + LeakyReLU -------------------
        pad2[pl.ds(1, L), :] = h
        h = None
        for k in range(K):
            d = jnp.dot(pad2[pl.ds(k, L2, stride=2), :], w2_ref[k],
                        preferred_element_type=jnp.float32)
            h = d if h is None else h + d
        h = leaky(h + b2_ref[...])                  # (L2, 128)

        # --- Conv1d(128 -> 256, k=3, s=2, p=1) + LeakyReLU -------------------
        pad3[pl.ds(1, L2), :] = h
        h = None
        for k in range(K):
            d = jnp.dot(pad3[pl.ds(k, L4, stride=2), :], w3_ref[k],
                        preferred_element_type=jnp.float32)
            h = d if h is None else h + d
        h = leaky(h + b3_ref[...])                  # (L4, 256)

        # --- Linear(conv_out -> H) + LeakyReLU -------------------------------
        # torch's channel-major flatten of (256, L4) is folded into wc1
        # (see prepare_params), so we contract directly over (L4, 256) rows.
        hid = None
        for l in range(L4):
            d = jnp.dot(h[l:l + 1, :], wc1_ref[l],
                        preferred_element_type=jnp.float32)
            hid = d if hid is None else hid + d
        hid = leaky(hid + bc1_ref[...])             # (1, H)

        # TODO(synk): Dropout(0.5) only acts in training mode; eval (identity) here.

        # --- Linear(H -> 1) + Sigmoid: VPU multiply-reduce, SMEM scalar bias -
        logit = jnp.sum(hid * wc2_ref[...], axis=-1, keepdims=True) + bc2_ref[0]
        o_ref[pl.ds(bi, 1), :] = jax.nn.sigmoid(logit)


# ---------------------------------------------------------------------------
# One-time parameter repack (hoisted out of the jitted forward)
# ---------------------------------------------------------------------------
def prepare_params(params):
    """Repack torch-layout params into the kernel's MXU-friendly layout."""
    prep = {}
    for i in (1, 2, 3):
        w = params[f"c{i}_w"]                                           # (C_out, C_in, K)
        prep[f"c{i}_w"] = jnp.transpose(w, (2, 1, 0)).astype(jnp.float32)  # (K, C_in, C_out)
        prep[f"c{i}_b"] = params[f"c{i}_b"].reshape(1, -1).astype(jnp.float32)
    H, conv_out = params["l1_w"].shape
    C3 = params["c3_w"].shape[0]
    L4 = conv_out // C3
    assert C3 * L4 == conv_out
    # torch flattens (B, 256, L4) channel-major; fold that permutation into
    # the weight so a row-major (L4, 256) in-kernel activation is equivalent.
    w1 = params["l1_w"].reshape(H, C3, L4)                              # [h, c, l]
    prep["l1_w"] = jnp.transpose(w1, (2, 1, 0)).astype(jnp.float32)     # (L4, C3, H)
    prep["l1_b"] = params["l1_b"].reshape(1, H).astype(jnp.float32)
    prep["l2_w"] = params["l2_w"].reshape(1, H).astype(jnp.float32)     # row for VPU reduce
    prep["l2_b"] = params["l2_b"].reshape(1).astype(jnp.float32)        # SMEM scalar
    return prep


# ---------------------------------------------------------------------------
# Forward wrapper: a single pallas_call, no XLA glue ops
# ---------------------------------------------------------------------------
def trade_discriminator_forward(x, prep):
    """x: (B, sequence_length, input_dim) -- same input as the PyTorch module."""
    B, L, C_in = x.shape
    K, _, C1 = prep["c1_w"].shape
    C2 = prep["c2_w"].shape[2]
    C3 = prep["c3_w"].shape[2]
    L2 = (L + 2 - K) // 2 + 1            # conv2: k=3, s=2, p=1
    L4 = (L2 + 2 - K) // 2 + 1           # conv3: k=3, s=2, p=1
    L4w, _, H = prep["l1_w"].shape
    assert L4w == L4, "classifier weights don't match conv output length"

    TB = B if B <= 8 else 8              # batch tile per grid step
    assert B % TB == 0
    grid = (B // TB,)

    flops = 2 * B * (K * C_in * C1 * L + K * C1 * C2 * L2 +
                     K * C2 * C3 * L4 + L4 * C3 * H + H)
    bytes_accessed = 4 * (int(x.size) + sum(int(v.size) for v in prep.values()) + B)

    return pl.pallas_call(
        _fused_forward_kernel,
        out_shape=jax.ShapeDtypeStruct((B, 1), jnp.float32),
        grid=grid,
        in_specs=[
            pl.BlockSpec((TB, L, C_in), lambda i: (i, 0, 0)),    # x (batch tile)
            pl.BlockSpec((K, C_in, C1), lambda i: (0, 0, 0)),    # conv1 w
            pl.BlockSpec((1, C1), lambda i: (0, 0)),             # conv1 b
            pl.BlockSpec((K, C1, C2), lambda i: (0, 0, 0)),      # conv2 w
            pl.BlockSpec((1, C2), lambda i: (0, 0)),             # conv2 b
            pl.BlockSpec((K, C2, C3), lambda i: (0, 0, 0)),      # conv3 w
            pl.BlockSpec((1, C3), lambda i: (0, 0)),             # conv3 b
            pl.BlockSpec((L4, C3, H), lambda i: (0, 0, 0)),      # l1 w (perm-folded)
            pl.BlockSpec((1, H), lambda i: (0, 0)),              # l1 b
            pl.BlockSpec((1, H), lambda i: (0, 0)),              # l2 w (row)
            pl.BlockSpec(memory_space=pltpu.MemorySpace.SMEM),   # l2 b (scalar)
        ],
        out_specs=pl.BlockSpec((TB, 1), lambda i: (i, 0)),
        scratch_shapes=[
            pltpu.VMEM((L + 2, C_in), jnp.float32),   # padded input
            pltpu.VMEM((L + 2, C1), jnp.float32),     # padded conv1 output
            pltpu.VMEM((L2 + 2, C2), jnp.float32),    # padded conv2 output
        ],
        compiler_params=pltpu.CompilerParams(
            dimension_semantics=("parallel",)),
        cost_estimate=pl.CostEstimate(flops=flops, transcendentals=B,
                                      bytes_accessed=bytes_accessed),
    )(x.astype(jnp.float32),
      prep["c1_w"], prep["c1_b"], prep["c2_w"], prep["c2_b"],
      prep["c3_w"], prep["c3_b"], prep["l1_w"], prep["l1_b"],
      prep["l2_w"], prep["l2_b"])


# ---------------------------------------------------------------------------
# Params (torch layout) and a pure-JAX reference for validation
# ---------------------------------------------------------------------------
def init_params(key, input_dim=4, hidden_dim=32, sequence_length=8):
    ks = jax.random.split(key, 10)
    scale = 0.05
    conv_out = 256 * (sequence_length // 4)
    return {
        "c1_w": jax.random.normal(ks[0], (64, input_dim, 3), jnp.float32) * scale,
        "c1_b": jax.random.normal(ks[1], (64,), jnp.float32) * scale,
        "c2_w": jax.random.normal(ks[2], (128, 64, 3), jnp.float32) * scale,
        "c2_b": jax.random.normal(ks[3], (128,), jnp.float32) * scale,
        "c3_w": jax.random.normal(ks[4], (256, 128, 3), jnp.float32) * scale,
        "c3_b": jax.random.normal(ks[5], (256,), jnp.float32) * scale,
        "l1_w": jax.random.normal(ks[6], (hidden_dim, conv_out), jnp.float32) * scale,
        "l1_b": jax.random.normal(ks[7], (hidden_dim,), jnp.float32) * scale,
        "l2_w": jax.random.normal(ks[8], (1, hidden_dim), jnp.float32) * scale,
        "l2_b": jax.random.normal(ks[9], (1,), jnp.float32) * scale,
    }


def _reference_forward(x, params):
    """Plain-JAX mirror of the PyTorch module (used only to validate the kernel)."""
    hi = jax.lax.Precision.HIGHEST

    def conv1d(h, w, b, stride):
        B, L, C_in = h.shape
        C_out, _, K = w.shape
        hp = jnp.pad(h, ((0, 0), (1, 1), (0, 0)))
        L_out = (L + 2 - K) // stride + 1
        cols = [hp[:, k:k + stride * L_out:stride, :] for k in range(K)]
        xcol = jnp.concatenate(cols, axis=-1)
        wcol = jnp.transpose(w, (2, 1, 0)).reshape(K * C_in, C_out)
        out = jnp.einsum("blk,kc->blc", xcol, wcol, precision=hi) + b
        return jnp.where(out > 0, out, 0.2 * out)

    h = conv1d(x, params["c1_w"], params["c1_b"], 1)
    h = conv1d(h, params["c2_w"], params["c2_b"], 2)
    h = conv1d(h, params["c3_w"], params["c3_b"], 2)
    feat = jnp.transpose(h, (0, 2, 1)).reshape(h.shape[0], -1)
    hid = jnp.einsum("bd,hd->bh", feat, params["l1_w"], precision=hi) + params["l1_b"]
    hid = jnp.where(hid > 0, hid, 0.2 * hid)
    logit = jnp.einsum("bh,oh->bo", hid, params["l2_w"], precision=hi) + params["l2_b"]
    return jax.nn.sigmoid(logit)


if __name__ == "__main__":
    B, SEQ, IN_DIM, HIDDEN = 2, 8, 4, 32

    params = init_params(jax.random.PRNGKey(42), input_dim=IN_DIM,
                         hidden_dim=HIDDEN, sequence_length=SEQ)
    x = jax.random.normal(jax.random.PRNGKey(0), (B, SEQ, IN_DIM), jnp.float32)

    prep = prepare_params(params)                 # one-time weight repack
    fwd = jax.jit(trade_discriminator_forward)
    out = jax.block_until_ready(fwd(x, prep))

    assert out.shape == (B, 1), out.shape
    assert bool(jnp.all((out >= 0.0) & (out <= 1.0)))
    ref = _reference_forward(x, params)
    assert bool(jnp.allclose(out, ref, atol=2e-3, rtol=2e-3)), (out, ref)
    print("KERNEL_OK")
</pallas_src>

<mosaic_0001>
module attributes {stable_mosaic.version = 11 : i64} {
  func.func @_fused_forward_kernel(%arg0: i32, %arg1: memref<2x8x4xf32, #tpu.memory_space<vmem>>, %arg2: memref<3x4x64xf32, #tpu.memory_space<vmem>>, %arg3: memref<1x64xf32, #tpu.memory_space<vmem>>, %arg4: memref<3x64x128xf32, #tpu.memory_space<vmem>>, %arg5: memref<1x128xf32, #tpu.memory_space<vmem>>, %arg6: memref<3x128x256xf32, #tpu.memory_space<vmem>>, %arg7: memref<1x256xf32, #tpu.memory_space<vmem>>, %arg8: memref<2x256x32xf32, #tpu.memory_space<vmem>>, %arg9: memref<1x32xf32, #tpu.memory_space<vmem>>, %arg10: memref<1x32xf32, #tpu.memory_space<vmem>>, %arg11: memref<1xf32, #tpu.memory_space<smem>>, %arg12: memref<2x1xf32, #tpu.memory_space<vmem>>, %arg13: memref<10x4xf32, #tpu.memory_space<vmem>>, %arg14: memref<10x64xf32, #tpu.memory_space<vmem>>, %arg15: memref<6x128xf32, #tpu.memory_space<vmem>>) attributes {dimension_semantics = [#tpu.dimension_semantics<parallel>], iteration_bounds = array<i64: 1>, scalar_prefetch = 0 : i64, scratch_operands = 3 : i64, tpu.core_type = #tpu.core_type<tc>, window_params = [{transform_indices = @transform_0, window_bounds = array<i64: 2, 8, 4>}, {pipeline_mode = #tpu.pipeline_mode<synchronous>, transform_indices = @transform_1, window_bounds = array<i64: 3, 4, 64>}, {pipeline_mode = #tpu.pipeline_mode<synchronous>, transform_indices = @transform_2, window_bounds = array<i64: 1, 64>}, {pipeline_mode = #tpu.pipeline_mode<synchronous>, transform_indices = @transform_3, window_bounds = array<i64: 3, 64, 128>}, {pipeline_mode = #tpu.pipeline_mode<synchronous>, transform_indices = @transform_4, window_bounds = array<i64: 1, 128>}, {pipeline_mode = #tpu.pipeline_mode<synchronous>, transform_indices = @transform_5, window_bounds = array<i64: 3, 128, 256>}, {pipeline_mode = #tpu.pipeline_mode<synchronous>, transform_indices = @transform_6, window_bounds = array<i64: 1, 256>}, {pipeline_mode = #tpu.pipeline_mode<synchronous>, transform_indices = @transform_7, window_bounds = array<i64: 2, 256, 32>}, {pipeline_mode = #tpu.pipeline_mode<synchronous>, transform_indices = @transform_8, window_bounds = array<i64: 1, 32>}, {pipeline_mode = #tpu.pipeline_mode<synchronous>, transform_indices = @transform_9, window_bounds = array<i64: 1, 32>}, {transform_indices = @transform_10, window_bounds = array<i64: 1>}, {transform_indices = @transform_11, window_bounds = array<i64: 2, 1>}]} {
    %cst = arith.constant 0.000000e+00 : f32
    %0 = vector.broadcast %cst : f32 to vector<10x4xf32>
    %c0 = arith.constant 0 : index
    %c0_0 = arith.constant 0 : index
    %1 = vector.load %arg13[%c0, %c0_0] : memref<10x4xf32, #tpu.memory_space<vmem>>, vector<10x4xf32>
    tpu.vector_store %arg13[%c0, %c0_0], %0 {strides = array<i32>} : memref<10x4xf32, #tpu.memory_space<vmem>>, vector<10x4xf32>,
    %cst_1 = arith.constant 0.000000e+00 : f32
    %2 = vector.broadcast %cst_1 : f32 to vector<10x64xf32>
    %c0_2 = arith.constant 0 : index
    %c0_3 = arith.constant 0 : index
    %3 = vector.load %arg14[%c0_2, %c0_3] : memref<10x64xf32, #tpu.memory_space<vmem>>, vector<10x64xf32>
    tpu.vector_store %arg14[%c0_2, %c0_3], %2 {strides = array<i32>} : memref<10x64xf32, #tpu.memory_space<vmem>>, vector<10x64xf32>,
    %cst_4 = arith.constant 0.000000e+00 : f32
    %4 = vector.broadcast %cst_4 : f32 to vector<6x128xf32>
    %c0_5 = arith.constant 0 : index
    %c0_6 = arith.constant 0 : index
    %5 = vector.load %arg15[%c0_5, %c0_6] : memref<6x128xf32, #tpu.memory_space<vmem>>, vector<6x128xf32>
    tpu.vector_store %arg15[%c0_5, %c0_6], %4 {strides = array<i32>} : memref<6x128xf32, #tpu.memory_space<vmem>>, vector<6x128xf32>,
    %c0_7 = arith.constant 0 : index
    %c0_8 = arith.constant 0 : index
    %c0_9 = arith.constant 0 : index
    %6 = vector.load %arg1[%c0_7, %c0_8, %c0_9] : memref<2x8x4xf32, #tpu.memory_space<vmem>>, vector<1x8x4xf32>
    %7 = vector.shape_cast %6 : vector<1x8x4xf32> to vector<8x4xf32>
    %c1 = arith.constant 1 : index
    %c0_10 = arith.constant 0 : index
    %8 = vector.load %arg13[%c1, %c0_10] : memref<10x4xf32, #tpu.memory_space<vmem>>, vector<8x4xf32>
    tpu.vector_store %arg13[%c1, %c0_10], %7 {strides = array<i32>} : memref<10x4xf32, #tpu.memory_space<vmem>>, vector<8x4xf32>,
    %c0_11 = arith.constant 0 : index
    %c0_12 = arith.constant 0 : index
    %9 = vector.load %arg13[%c0_11, %c0_12] : memref<10x4xf32, #tpu.memory_space<vmem>>, vector<8x4xf32>
    %c0_13 = arith.constant 0 : index
    %c0_14 = arith.constant 0 : index
    %c0_15 = arith.constant 0 : index
    %10 = vector.load %arg2[%c0_13, %c0_14, %c0_15] : memref<3x4x64xf32, #tpu.memory_space<vmem>>, vector<1x4x64xf32>
    %11 = vector.shape_cast %10 : vector<1x4x64xf32> to vector<4x64xf32>
    %cst_16 = arith.constant dense<0.000000e+00> : vector<8x64xf32>
    %12 = tpu.matmul %9, %11, %cst_16 {dimension_numbers = #tpu.dot_dimension_numbers<[1], [0], [0], [1], [0, 0, 1, 1], [], []>} : vector<8x4xf32>, vector<4x64xf32>, vector<8x64xf32> -> vector<8x64xf32>
    %c1_17 = arith.constant 1 : index
    %c0_18 = arith.constant 0 : index
    %13 = vector.load %arg13[%c1_17, %c0_18] : memref<10x4xf32, #tpu.memory_space<vmem>>, vector<8x4xf32>
    %c1_19 = arith.constant 1 : index
    %c0_20 = arith.constant 0 : index
    %c0_21 = arith.constant 0 : index
    %14 = vector.load %arg2[%c1_19, %c0_20, %c0_21] : memref<3x4x64xf32, #tpu.memory_space<vmem>>, vector<1x4x64xf32>
    %15 = vector.shape_cast %14 : vector<1x4x64xf32> to vector<4x64xf32>
    %cst_22 = arith.constant dense<0.000000e+00> : vector<8x64xf32>
    %16 = tpu.matmul %13, %15, %cst_22 {dimension_numbers = #tpu.dot_dimension_numbers<[1], [0], [0], [1], [0, 0, 1, 1], [], []>} : vector<8x4xf32>, vector<4x64xf32>, vector<8x64xf32> -> vector<8x64xf32>
    %17 = arith.addf %12, %16 : vector<8x64xf32>
    %c2 = arith.constant 2 : index
    %c0_23 = arith.constant 0 : index
    %18 = vector.load %arg13[%c2, %c0_23] : memref<10x4xf32, #tpu.memory_space<vmem>>, vector<8x4xf32>
    %c2_24 = arith.constant 2 : index
    %c0_25 = arith.constant 0 : index
    %c0_26 = arith.constant 0 : index
    %19 = vector.load %arg2[%c2_24, %c0_25, %c0_26] : memref<3x4x64xf32, #tpu.memory_space<vmem>>, vector<1x4x64xf32>
    %20 = vector.shape_cast %19 : vector<1x4x64xf32> to vector<4x64xf32>
    %cst_27 = arith.constant dense<0.000000e+00> : vector<8x64xf32>
    %21 = tpu.matmul %18, %20, %cst_27 {dimension_numbers = #tpu.dot_dimension_numbers<[1], [0], [0], [1], [0, 0, 1, 1], [], []>} : vector<8x4xf32>, vector<4x64xf32>, vector<8x64xf32> -> vector<8x64xf32>
    %22 = arith.addf %17, %21 : vector<8x64xf32>
    %c0_28 = arith.constant 0 : index
    %c0_29 = arith.constant 0 : index
    %23 = vector.load %arg3[%c0_28, %c0_29] : memref<1x64xf32, #tpu.memory_space<vmem>>, vector<1x64xf32>
    %24 = vector.broadcast %23 : vector<1x64xf32> to vector<8x64xf32>
    %25 = arith.addf %22, %24 : vector<8x64xf32>
    %cst_30 = arith.constant 0.000000e+00 : f32
    %26 = vector.broadcast %cst_30 : f32 to vector<8x64xf32>
    %27 = arith.cmpf ogt, %25, %26 : vector<8x64xf32>
    %cst_31 = arith.constant 2.000000e-01 : f32
    %28 = vector.broadcast %cst_31 : f32 to vector<8x64xf32>
    %29 = arith.mulf %28, %25 : vector<8x64xf32>
    %30 = arith.select %27, %25, %29 : vector<8x64xi1>, vector<8x64xf32>
    %c1_32 = arith.constant 1 : index
    %c0_33 = arith.constant 0 : index
    %31 = vector.load %arg14[%c1_32, %c0_33] : memref<10x64xf32, #tpu.memory_space<vmem>>, vector<8x64xf32>
    tpu.vector_store %arg14[%c1_32, %c0_33], %30 {strides = array<i32>} : memref<10x64xf32, #tpu.memory_space<vmem>>, vector<8x64xf32>,
    %c0_34 = arith.constant 0 : index
    %c0_35 = arith.constant 0 : index
    %32 = tpu.strided_load %arg14[%c0_34, %c0_35] {strides = array<i32: 2, 1>} : memref<10x64xf32, #tpu.memory_space<vmem>>, vector<4x64xf32>
    %c0_36 = arith.constant 0 : index
    %c0_37 = arith.constant 0 : index
    %c0_38 = arith.constant 0 : index
    %33 = vector.load %arg4[%c0_36, %c0_37, %c0_38] : memref<3x64x128xf32, #tpu.memory_space<vmem>>, vector<1x64x128xf32>
    %34 = vector.shape_cast %33 : vector<1x64x128xf32> to vector<64x128xf32>
    %cst_39 = arith.constant dense<0.000000e+00> : vector<4x128xf32>
    %35 = tpu.matmul %32, %34, %cst_39 {dimension_numbers = #tpu.dot_dimension_numbers<[1], [0], [0], [1], [0, 0, 1, 1], [], []>} : vector<4x64xf32>, vector<64x128xf32>, vector<4x128xf32> -> vector<4x128xf32>
    %c1_40 = arith.constant 1 : index
    %c0_41 = arith.constant 0 : index
    %36 = tpu.strided_load %arg14[%c1_40, %c0_41] {strides = array<i32: 2, 1>} : memref<10x64xf32, #tpu.memory_space<vmem>>, vector<4x64xf32>
    %c1_42 = arith.constant 1 : index
    %c0_43 = arith.constant 0 : index
    %c0_44 = arith.constant 0 : index
    %37 = vector.load %arg4[%c1_42, %c0_43, %c0_44] : memref<3x64x128xf32, #tpu.memory_space<vmem>>, vector<1x64x128xf32>
    %38 = vector.shape_cast %37 : vector<1x64x128xf32> to vector<64x128xf32>
    %cst_45 = arith.constant dense<0.000000e+00> : vector<4x128xf32>
    %39 = tpu.matmul %36, %38, %cst_45 {dimension_numbers = #tpu.dot_dimension_numbers<[1], [0], [0], [1], [0, 0, 1, 1], [], []>} : vector<4x64xf32>, vector<64x128xf32>, vector<4x128xf32> -> vector<4x128xf32>
    %40 = arith.addf %35, %39 : vector<4x128xf32>
    %c2_46 = arith.constant 2 : index
    %c0_47 = arith.constant 0 : index
    %41 = tpu.strided_load %arg14[%c2_46, %c0_47] {strides = array<i32: 2, 1>} : memref<10x64xf32, #tpu.memory_space<vmem>>, vector<4x64xf32>
    %c2_48 = arith.constant 2 : index
    %c0_49 = arith.constant 0 : index
    %c0_50 = arith.constant 0 : index
    %42 = vector.load %arg4[%c2_48, %c0_49, %c0_50] : memref<3x64x128xf32, #tpu.memory_space<vmem>>, vector<1x64x128xf32>
    %43 = vector.shape_cast %42 : vector<1x64x128xf32> to vector<64x128xf32>
    %cst_51 = arith.constant dense<0.000000e+00> : vector<4x128xf32>
    %44 = tpu.matmul %41, %43, %cst_51 {dimension_numbers = #tpu.dot_dimension_numbers<[1], [0], [0], [1], [0, 0, 1, 1], [], []>} : vector<4x64xf32>, vector<64x128xf32>, vector<4x128xf32> -> vector<4x128xf32>
    %45 = arith.addf %40, %44 : vector<4x128xf32>
    %c0_52 = arith.constant 0 : index
    %c0_53 = arith.constant 0 : index
    %46 = vector.load %arg5[%c0_52, %c0_53] : memref<1x128xf32, #tpu.memory_space<vmem>>, vector<1x128xf32>
    %47 = vector.broadcast %46 : vector<1x128xf32> to vector<4x128xf32>
    %48 = arith.addf %45, %47 : vector<4x128xf32>
    %cst_54 = arith.constant 0.000000e+00 : f32
    %49 = vector.broadcast %cst_54 : f32 to vector<4x128xf32>
    %50 = arith.cmpf ogt, %48, %49 : vector<4x128xf32>
    %cst_55 = arith.constant 2.000000e-01 : f32
    %51 = vector.broadcast %cst_55 : f32 to vector<4x128xf32>
    %52 = arith.mulf %51, %48 : vector<4x128xf32>
    %53 = arith.select %50, %48, %52 : vector<4x128xi1>, vector<4x128xf32>
    %c1_56 = arith.constant 1 : index
    %c0_57 = arith.constant 0 : index
    %54 = vector.load %arg15[%c1_56, %c0_57] : memref<6x128xf32, #tpu.memory_space<vmem>>, vector<4x128xf32>
    tpu.vector_store %arg15[%c1_56, %c0_57], %53 {strides = array<i32>} : memref<6x128xf32, #tpu.memory_space<vmem>>, vector<4x128xf32>,
    %c0_58 = arith.constant 0 : index
    %c0_59 = arith.constant 0 : index
    %55 = tpu.strided_load %arg15[%c0_58, %c0_59] {strides = array<i32: 2, 1>} : memref<6x128xf32, #tpu.memory_space<vmem>>, vector<2x128xf32>
    %c0_60 = arith.constant 0 : index
    %c0_61 = arith.constant 0 : index
    %c0_62 = arith.constant 0 : index
    %56 = vector.load %arg6[%c0_60, %c0_61, %c0_62] : memref<3x128x256xf32, #tpu.memory_space<vmem>>, vector<1x128x256xf32>
    %57 = vector.shape_cast %56 : vector<1x128x256xf32> to vector<128x256xf32>
    %cst_63 = arith.constant dense<0.000000e+00> : vector<2x256xf32>
    %58 = tpu.matmul %55, %57, %cst_63 {dimension_numbers = #tpu.dot_dimension_numbers<[1], [0], [0], [1], [0, 0, 1, 1], [], []>} : vector<2x128xf32>, vector<128x256xf32>, vector<2x256xf32> -> vector<2x256xf32>
    %c1_64 = arith.constant 1 : index
    %c0_65 = arith.constant 0 : index
    %59 = tpu.strided_load %arg15[%c1_64, %c0_65] {strides = array<i32: 2, 1>} : memref<6x128xf32, #tpu.memory_space<vmem>>, vector<2x128xf32>
    %c1_66 = arith.constant 1 : index
    %c0_67 = arith.constant 0 : index
    %c0_68 = arith.constant 0 : index
    %60 = vector.load %arg6[%c1_66, %c0_67, %c0_68] : memref<3x128x256xf32, #tpu.memory_space<vmem>>, vector<1x128x256xf32>
    %61 = vector.shape_cast %60 : vector<1x128x256xf32> to vector<128x256xf32>
    %cst_69 = arith.constant dense<0.000000e+00> : vector<2x256xf32>
    %62 = tpu.matmul %59, %61, %cst_69 {dimension_numbers = #tpu.dot_dimension_numbers<[1], [0], [0], [1], [0, 0, 1, 1], [], []>} : vector<2x128xf32>, vector<128x256xf32>, vector<2x256xf32> -> vector<2x256xf32>
    %63 = arith.addf %58, %62 : vector<2x256xf32>
    %c2_70 = arith.constant 2 : index
    %c0_71 = arith.constant 0 : index
    %64 = tpu.strided_load %arg15[%c2_70, %c0_71] {strides = array<i32: 2, 1>} : memref<6x128xf32, #tpu.memory_space<vmem>>, vector<2x128xf32>
    %c2_72 = arith.constant 2 : index
    %c0_73 = arith.constant 0 : index
    %c0_74 = arith.constant 0 : index
    %65 = vector.load %arg6[%c2_72, %c0_73, %c0_74] : memref<3x128x256xf32, #tpu.memory_space<vmem>>, vector<1x128x256xf32>
    %66 = vector.shape_cast %65 : vector<1x128x256xf32> to vector<128x256xf32>
    %cst_75 = arith.constant dense<0.000000e+00> : vector<2x256xf32>
    %67 = tpu.matmul %64, %66, %cst_75 {dimension_numbers = #tpu.dot_dimension_numbers<[1], [0], [0], [1], [0, 0, 1, 1], [], []>} : vector<2x128xf32>, vector<128x256xf32>, vector<2x256xf32> -> vector<2x256xf32>
    %68 = arith.addf %63, %67 : vector<2x256xf32>
    %c0_76 = arith.constant 0 : index
    %c0_77 = arith.constant 0 : index
    %69 = vector.load %arg7[%c0_76, %c0_77] : memref<1x256xf32, #tpu.memory_space<vmem>>, vector<1x256xf32>
    %70 = vector.broadcast %69 : vector<1x256xf32> to vector<2x256xf32>
    %71 = arith.addf %68, %70 : vector<2x256xf32>
    %cst_78 = arith.constant 0.000000e+00 : f32
    %72 = vector.broadcast %cst_78 : f32 to vector<2x256xf32>
    %73 = arith.cmpf ogt, %71, %72 : vector<2x256xf32>
    %cst_79 = arith.constant 2.000000e-01 : f32
    %74 = vector.broadcast %cst_79 : f32 to vector<2x256xf32>
    %75 = arith.mulf %74, %71 : vector<2x256xf32>
    %76 = arith.select %73, %71, %75 : vector<2x256xi1>, vector<2x256xf32>
    %77 = vector.extract_strided_slice %76 {offsets = [0, 0], sizes = [1, 256], strides = [1, 1]} : vector<2x256xf32> to vector<1x256xf32>
    %c0_80 = arith.constant 0 : index
    %c0_81 = arith.constant 0 : index
    %c0_82 = arith.constant 0 : index
    %78 = vector.load %arg8[%c0_80, %c0_81, %c0_82] : memref<2x256x32xf32, #tpu.memory_space<vmem>>, vector<1x256x32xf32>
    %79 = vector.shape_cast %78 : vector<1x256x32xf32> to vector<256x32xf32>
    %cst_83 = arith.constant dense<0.000000e+00> : vector<1x32xf32>
    %80 = tpu.matmul %77, %79, %cst_83 {dimension_numbers = #tpu.dot_dimension_numbers<[1], [0], [0], [1], [0, 0, 1, 1], [], []>} : vector<1x256xf32>, vector<256x32xf32>, vector<1x32xf32> -> vector<1x32xf32>
    %81 = vector.extract_strided_slice %76 {offsets = [1, 0], sizes = [1, 256], strides = [1, 1]} : vector<2x256xf32> to vector<1x256xf32>
    %c1_84 = arith.constant 1 : index
    %c0_85 = arith.constant 0 : index
    %c0_86 = arith.constant 0 : index
    %82 = vector.load %arg8[%c1_84, %c0_85, %c0_86] : memref<2x256x32xf32, #tpu.memory_space<vmem>>, vector<1x256x32xf32>
    %83 = vector.shape_cast %82 : vector<1x256x32xf32> to vector<256x32xf32>
    %cst_87 = arith.constant dense<0.000000e+00> : vector<1x32xf32>
    %84 = tpu.matmul %81, %83, %cst_87 {dimension_numbers = #tpu.dot_dimension_numbers<[1], [0], [0], [1], [0, 0, 1, 1], [], []>} : vector<1x256xf32>, vector<256x32xf32>, vector<1x32xf32> -> vector<1x32xf32>
    %85 = arith.addf %80, %84 : vector<1x32xf32>
    %c0_88 = arith.constant 0 : index
    %c0_89 = arith.constant 0 : index
    %86 = vector.load %arg9[%c0_88, %c0_89] : memref<1x32xf32, #tpu.memory_space<vmem>>, vector<1x32xf32>
    %87 = arith.addf %85, %86 : vector<1x32xf32>
    %cst_90 = arith.constant 0.000000e+00 : f32
    %88 = vector.broadcast %cst_90 : f32 to vector<1x32xf32>
    %89 = arith.cmpf ogt, %87, %88 : vector<1x32xf32>
    %cst_91 = arith.constant 2.000000e-01 : f32
    %90 = vector.broadcast %cst_91 : f32 to vector<1x32xf32>
    %91 = arith.mulf %90, %87 : vector<1x32xf32>
    %92 = arith.select %89, %87, %91 : vector<1x32xi1>, vector<1x32xf32>
    %c0_92 = arith.constant 0 : index
    %c0_93 = arith.constant 0 : index
    %93 = vector.load %arg10[%c0_92, %c0_93] : memref<1x32xf32, #tpu.memory_space<vmem>>, vector<1x32xf32>
    %94 = arith.mulf %92, %93 : vector<1x32xf32>
    %cst_94 = arith.constant dense<0.000000e+00> : vector<1xf32>
    %95 = vector.multi_reduction <add>, %94, %cst_94 [1] : vector<1x32xf32> to vector<1xf32>
    %96 = vector.shape_cast %95 : vector<1xf32> to vector<1x1xf32>
    %c0_95 = arith.constant 0 : index
    %97 = memref.load %arg11[%c0_95] : memref<1xf32, #tpu.memory_space<smem>>
    %98 = vector.broadcast %97 : f32 to vector<1x1xf32>
    %99 = arith.addf %96, %98 : vector<1x1xf32>
    %100 = arith.negf %99 : vector<1x1xf32>
    %101 = math.exp %100 : vector<1x1xf32>
    %cst_96 = arith.constant 1.000000e+00 : f32
    %102 = vector.broadcast %cst_96 : f32 to vector<1x1xf32>
    %103 = arith.addf %102, %101 : vector<1x1xf32>
    %104 = arith.divf %102, %103 : vector<1x1xf32>
    %c0_97 = arith.constant 0 : index
    %c0_98 = arith.constant 0 : index
    %105 = vector.load %arg12[%c0_97, %c0_98] : memref<2x1xf32, #tpu.memory_space<vmem>>, vector<1x1xf32>
    tpu.vector_store %arg12[%c0_97, %c0_98], %104 {strides = array<i32>} : memref<2x1xf32, #tpu.memory_space<vmem>>, vector<1x1xf32>,
    %c1_99 = arith.constant 1 : index
    %c0_100 = arith.constant 0 : index
    %c0_101 = arith.constant 0 : index
    %106 = vector.load %arg1[%c1_99, %c0_100, %c0_101] : memref<2x8x4xf32, #tpu.memory_space<vmem>>, vector<1x8x4xf32>
    %107 = vector.shape_cast %106 : vector<1x8x4xf32> to vector<8x4xf32>
    %c1_102 = arith.constant 1 : index
    %c0_103 = arith.constant 0 : index
    %108 = vector.load %arg13[%c1_102, %c0_103] : memref<10x4xf32, #tpu.memory_space<vmem>>, vector<8x4xf32>
    tpu.vector_store %arg13[%c1_102, %c0_103], %107 {strides = array<i32>} : memref<10x4xf32, #tpu.memory_space<vmem>>, vector<8x4xf32>,
    %c0_104 = arith.constant 0 : index
    %c0_105 = arith.constant 0 : index
    %109 = vector.load %arg13[%c0_104, %c0_105] : memref<10x4xf32, #tpu.memory_space<vmem>>, vector<8x4xf32>
    %c0_106 = arith.constant 0 : index
    %c0_107 = arith.constant 0 : index
    %c0_108 = arith.constant 0 : index
    %110 = vector.load %arg2[%c0_106, %c0_107, %c0_108] : memref<3x4x64xf32, #tpu.memory_space<vmem>>, vector<1x4x64xf32>
    %111 = vector.shape_cast %110 : vector<1x4x64xf32> to vector<4x64xf32>
    %cst_109 = arith.constant dense<0.000000e+00> : vector<8x64xf32>
    %112 = tpu.matmul %109, %111, %cst_109 {dimension_numbers = #tpu.dot_dimension_numbers<[1], [0], [0], [1], [0, 0, 1, 1], [], []>} : vector<8x4xf32>, vector<4x64xf32>, vector<8x64xf32> -> vector<8x64xf32>
    %c1_110 = arith.constant 1 : index
    %c0_111 = arith.constant 0 : index
    %113 = vector.load %arg13[%c1_110, %c0_111] : memref<10x4xf32, #tpu.memory_space<vmem>>, vector<8x4xf32>
    %c1_112 = arith.constant 1 : index
    %c0_113 = arith.constant 0 : index
    %c0_114 = arith.constant 0 : index
    %114 = vector.load %arg2[%c1_112, %c0_113, %c0_114] : memref<3x4x64xf32, #tpu.memory_space<vmem>>, vector<1x4x64xf32>
    %115 = vector.shape_cast %114 : vector<1x4x64xf32> to vector<4x64xf32>
    %cst_115 = arith.constant dense<0.000000e+00> : vector<8x64xf32>
    %116 = tpu.matmul %113, %115, %cst_115 {dimension_numbers = #tpu.dot_dimension_numbers<[1], [0], [0], [1], [0, 0, 1, 1], [], []>} : vector<8x4xf32>, vector<4x64xf32>, vector<8x64xf32> -> vector<8x64xf32>
    %117 = arith.addf %112, %116 : vector<8x64xf32>
    %c2_116 = arith.constant 2 : index
    %c0_117 = arith.constant 0 : index
    %118 = vector.load %arg13[%c2_116, %c0_117] : memref<10x4xf32, #tpu.memory_space<vmem>>, vector<8x4xf32>
    %c2_118 = arith.constant 2 : index
    %c0_119 = arith.constant 0 : index
    %c0_120 = arith.constant 0 : index
    %119 = vector.load %arg2[%c2_118, %c0_119, %c0_120] : memref<3x4x64xf32, #tpu.memory_space<vmem>>, vector<1x4x64xf32>
    %120 = vector.shape_cast %119 : vector<1x4x64xf32> to vector<4x64xf32>
    %cst_121 = arith.constant dense<0.000000e+00> : vector<8x64xf32>
    %121 = tpu.matmul %118, %120, %cst_121 {dimension_numbers = #tpu.dot_dimension_numbers<[1], [0], [0], [1], [0, 0, 1, 1], [], []>} : vector<8x4xf32>, vector<4x64xf32>, vector<8x64xf32> -> vector<8x64xf32>
    %122 = arith.addf %117, %121 : vector<8x64xf32>
    %c0_122 = arith.constant 0 : index
    %c0_123 = arith.constant 0 : index
    %123 = vector.load %arg3[%c0_122, %c0_123] : memref<1x64xf32, #tpu.memory_space<vmem>>, vector<1x64xf32>
    %124 = vector.broadcast %123 : vector<1x64xf32> to vector<8x64xf32>
    %125 = arith.addf %122, %124 : vector<8x64xf32>
    %cst_124 = arith.constant 0.000000e+00 : f32
    %126 = vector.broadcast %cst_124 : f32 to vector<8x64xf32>
    %127 = arith.cmpf ogt, %125, %126 : vector<8x64xf32>
    %cst_125 = arith.constant 2.000000e-01 : f32
    %128 = vector.broadcast %cst_125 : f32 to vector<8x64xf32>
    %129 = arith.mulf %128, %125 : vector<8x64xf32>
    %130 = arith.select %127, %125, %129 : vector<8x64xi1>, vector<8x64xf32>
    %c1_126 = arith.constant 1 : index
    %c0_127 = arith.constant 0 : index
    %131 = vector.load %arg14[%c1_126, %c0_127] : memref<10x64xf32, #tpu.memory_space<vmem>>, vector<8x64xf32>
    tpu.vector_store %arg14[%c1_126, %c0_127], %130 {strides = array<i32>} : memref<10x64xf32, #tpu.memory_space<vmem>>, vector<8x64xf32>,
    %c0_128 = arith.constant 0 : index
    %c0_129 = arith.constant 0 : index
    %132 = tpu.strided_load %arg14[%c0_128, %c0_129] {strides = array<i32: 2, 1>} : memref<10x64xf32, #tpu.memory_space<vmem>>, vector<4x64xf32>
    %c0_130 = arith.constant 0 : index
    %c0_131 = arith.constant 0 : index
    %c0_132 = arith.constant 0 : index
    %133 = vector.load %arg4[%c0_130, %c0_131, %c0_132] : memref<3x64x128xf32, #tpu.memory_space<vmem>>, vector<1x64x128xf32>
    %134 = vector.shape_cast %133 : vector<1x64x128xf32> to vector<64x128xf32>
    %cst_133 = arith.constant dense<0.000000e+00> : vector<4x128xf32>
    %135 = tpu.matmul %132, %134, %cst_133 {dimension_numbers = #tpu.dot_dimension_numbers<[1], [0], [0], [1], [0, 0, 1, 1], [], []>} : vector<4x64xf32>, vector<64x128xf32>, vector<4x128xf32> -> vector<4x128xf32>
    %c1_134 = arith.constant 1 : index
    %c0_135 = arith.constant 0 : index
    %136 = tpu.strided_load %arg14[%c1_134, %c0_135] {strides = array<i32: 2, 1>} : memref<10x64xf32, #tpu.memory_space<vmem>>, vector<4x64xf32>
    %c1_136 = arith.constant 1 : index
    %c0_137 = arith.constant 0 : index
    %c0_138 = arith.constant 0 : index
    %137 = vector.load %arg4[%c1_136, %c0_137, %c0_138] : memref<3x64x128xf32, #tpu.memory_space<vmem>>, vector<1x64x128xf32>
    %138 = vector.shape_cast %137 : vector<1x64x128xf32> to vector<64x128xf32>
    %cst_139 = arith.constant dense<0.000000e+00> : vector<4x128xf32>
    %139 = tpu.matmul %136, %138, %cst_139 {dimension_numbers = #tpu.dot_dimension_numbers<[1], [0], [0], [1], [0, 0, 1, 1], [], []>} : vector<4x64xf32>, vector<64x128xf32>, vector<4x128xf32> -> vector<4x128xf32>
    %140 = arith.addf %135, %139 : vector<4x128xf32>
    %c2_140 = arith.constant 2 : index
    %c0_141 = arith.constant 0 : index
    %141 = tpu.strided_load %arg14[%c2_140, %c0_141] {strides = array<i32: 2, 1>} : memref<10x64xf32, #tpu.memory_space<vmem>>, vector<4x64xf32>
    %c2_142 = arith.constant 2 : index
    %c0_143 = arith.constant 0 : index
    %c0_144 = arith.constant 0 : index
    %142 = vector.load %arg4[%c2_142, %c0_143, %c0_144] : memref<3x64x128xf32, #tpu.memory_space<vmem>>, vector<1x64x128xf32>
    %143 = vector.shape_cast %142 : vector<1x64x128xf32> to vector<64x128xf32>
    %cst_145 = arith.constant dense<0.000000e+00> : vector<4x128xf32>
    %144 = tpu.matmul %141, %143, %cst_145 {dimension_numbers = #tpu.dot_dimension_numbers<[1], [0], [0], [1], [0, 0, 1, 1], [], []>} : vector<4x64xf32>, vector<64x128xf32>, vector<4x128xf32> -> vector<4x128xf32>
    %145 = arith.addf %140, %144 : vector<4x128xf32>
    %c0_146 = arith.constant 0 : index
    %c0_147 = arith.constant 0 : index
    %146 = vector.load %arg5[%c0_146, %c0_147] : memref<1x128xf32, #tpu.memory_space<vmem>>, vector<1x128xf32>
    %147 = vector.broadcast %146 : vector<1x128xf32> to vector<4x128xf32>
    %148 = arith.addf %145, %147 : vector<4x128xf32>
    %cst_148 = arith.constant 0.000000e+00 : f32
    %149 = vector.broadcast %cst_148 : f32 to vector<4x128xf32>
    %150 = arith.cmpf ogt, %148, %149 : vector<4x128xf32>
    %cst_149 = arith.constant 2.000000e-01 : f32
    %151 = vector.broadcast %cst_149 : f32 to vector<4x128xf32>
    %152 = arith.mulf %151, %148 : vector<4x128xf32>
    %153 = arith.select %150, %148, %152 : vector<4x128xi1>, vector<4x128xf32>
    %c1_150 = arith.constant 1 : index
    %c0_151 = arith.constant 0 : index
    %154 = vector.load %arg15[%c1_150, %c0_151] : memref<6x128xf32, #tpu.memory_space<vmem>>, vector<4x128xf32>
    tpu.vector_store %arg15[%c1_150, %c0_151], %153 {strides = array<i32>} : memref<6x128xf32, #tpu.memory_space<vmem>>, vector<4x128xf32>,
    %c0_152 = arith.constant 0 : index
    %c0_153 = arith.constant 0 : index
    %155 = tpu.strided_load %arg15[%c0_152, %c0_153] {strides = array<i32: 2, 1>} : memref<6x128xf32, #tpu.memory_space<vmem>>, vector<2x128xf32>
    %c0_154 = arith.constant 0 : index
    %c0_155 = arith.constant 0 : index
    %c0_156 = arith.constant 0 : index
    %156 = vector.load %arg6[%c0_154, %c0_155, %c0_156] : memref<3x128x256xf32, #tpu.memory_space<vmem>>, vector<1x128x256xf32>
    %157 = vector.shape_cast %156 : vector<1x128x256xf32> to vector<128x256xf32>
    %cst_157 = arith.constant dense<0.000000e+00> : vector<2x256xf32>
    %158 = tpu.matmul %155, %157, %cst_157 {dimension_numbers = #tpu.dot_dimension_numbers<[1], [0], [0], [1], [0, 0, 1, 1], [], []>} : vector<2x128xf32>, vector<128x256xf32>, vector<2x256xf32> -> vector<2x256xf32>
    %c1_158 = arith.constant 1 : index
    %c0_159 = arith.constant 0 : index
    %159 = tpu.strided_load %arg15[%c1_158, %c0_159] {strides = array<i32: 2, 1>} : memref<6x128xf32, #tpu.memory_space<vmem>>, vector<2x128xf32>
    %c1_160 = arith.constant 1 : index
    %c0_161 = arith.constant 0 : index
    %c0_162 = arith.constant 0 : index
    %160 = vector.load %arg6[%c1_160, %c0_161, %c0_162] : memref<3x128x256xf32, #tpu.memory_space<vmem>>, vector<1x128x256xf32>
    %161 = vector.shape_cast %160 : vector<1x128x256xf32> to vector<128x256xf32>
    %cst_163 = arith.constant dense<0.000000e+00> : vector<2x256xf32>
    %162 = tpu.matmul %159, %161, %cst_163 {dimension_numbers = #tpu.dot_dimension_numbers<[1], [0], [0], [1], [0, 0, 1, 1], [], []>} : vector<2x128xf32>, vector<128x256xf32>, vector<2x256xf32> -> vector<2x256xf32>
    %163 = arith.addf %158, %162 : vector<2x256xf32>
    %c2_164 = arith.constant 2 : index
    %c0_165 = arith.constant 0 : index
    %164 = tpu.strided_load %arg15[%c2_164, %c0_165] {strides = array<i32: 2, 1>} : memref<6x128xf32, #tpu.memory_space<vmem>>, vector<2x128xf32>
    %c2_166 = arith.constant 2 : index
    %c0_167 = arith.constant 0 : index
    %c0_168 = arith.constant 0 : index
    %165 = vector.load %arg6[%c2_166, %c0_167, %c0_168] : memref<3x128x256xf32, #tpu.memory_space<vmem>>, vector<1x128x256xf32>
    %166 = vector.shape_cast %165 : vector<1x128x256xf32> to vector<128x256xf32>
    %cst_169 = arith.constant dense<0.000000e+00> : vector<2x256xf32>
    %167 = tpu.matmul %164, %166, %cst_169 {dimension_numbers = #tpu.dot_dimension_numbers<[1], [0], [0], [1], [0, 0, 1, 1], [], []>} : vector<2x128xf32>, vector<128x256xf32>, vector<2x256xf32> -> vector<2x256xf32>
    %168 = arith.addf %163, %167 : vector<2x256xf32>
    %c0_170 = arith.constant 0 : index
    %c0_171 = arith.constant 0 : index
    %169 = vector.load %arg7[%c0_170, %c0_171] : memref<1x256xf32, #tpu.memory_space<vmem>>, vector<1x256xf32>
    %170 = vector.broadcast %169 : vector<1x256xf32> to vector<2x256xf32>
    %171 = arith.addf %168, %170 : vector<2x256xf32>
    %cst_172 = arith.constant 0.000000e+00 : f32
    %172 = vector.broadcast %cst_172 : f32 to vector<2x256xf32>
    %173 = arith.cmpf ogt, %171, %172 : vector<2x256xf32>
    %cst_173 = arith.constant 2.000000e-01 : f32
    %174 = vector.broadcast %cst_173 : f32 to vector<2x256xf32>
    %175 = arith.mulf %174, %171 : vector<2x256xf32>
    %176 = arith.select %173, %171, %175 : vector<2x256xi1>, vector<2x256xf32>
    %177 = vector.extract_strided_slice %176 {offsets = [0, 0], sizes = [1, 256], strides = [1, 1]} : vector<2x256xf32> to vector<1x256xf32>
    %c0_174 = arith.constant 0 : index
    %c0_175 = arith.constant 0 : index
    %c0_176 = arith.constant 0 : index
    %178 = vector.load %arg8[%c0_174, %c0_175, %c0_176] : memref<2x256x32xf32, #tpu.memory_space<vmem>>, vector<1x256x32xf32>
    %179 = vector.shape_cast %178 : vector<1x256x32xf32> to vector<256x32xf32>
    %cst_177 = arith.constant dense<0.000000e+00> : vector<1x32xf32>
    %180 = tpu.matmul %177, %179, %cst_177 {dimension_numbers = #tpu.dot_dimension_numbers<[1], [0], [0], [1], [0, 0, 1, 1], [], []>} : vector<1x256xf32>, vector<256x32xf32>, vector<1x32xf32> -> vector<1x32xf32>
    %181 = vector.extract_strided_slice %176 {offsets = [1, 0], sizes = [1, 256], strides = [1, 1]} : vector<2x256xf32> to vector<1x256xf32>
    %c1_178 = arith.constant 1 : index
    %c0_179 = arith.constant 0 : index
    %c0_180 = arith.constant 0 : index
    %182 = vector.load %arg8[%c1_178, %c0_179, %c0_180] : memref<2x256x32xf32, #tpu.memory_space<vmem>>, vector<1x256x32xf32>
    %183 = vector.shape_cast %182 : vector<1x256x32xf32> to vector<256x32xf32>
    %cst_181 = arith.constant dense<0.000000e+00> : vector<1x32xf32>
    %184 = tpu.matmul %181, %183, %cst_181 {dimension_numbers = #tpu.dot_dimension_numbers<[1], [0], [0], [1], [0, 0, 1, 1], [], []>} : vector<1x256xf32>, vector<256x32xf32>, vector<1x32xf32> -> vector<1x32xf32>
    %185 = arith.addf %180, %184 : vector<1x32xf32>
    %c0_182 = arith.constant 0 : index
    %c0_183 = arith.constant 0 : index
    %186 = vector.load %arg9[%c0_182, %c0_183] : memref<1x32xf32, #tpu.memory_space<vmem>>, vector<1x32xf32>
    %187 = arith.addf %185, %186 : vector<1x32xf32>
    %cst_184 = arith.constant 0.000000e+00 : f32
    %188 = vector.broadcast %cst_184 : f32 to vector<1x32xf32>
    %189 = arith.cmpf ogt, %187, %188 : vector<1x32xf32>
    %cst_185 = arith.constant 2.000000e-01 : f32
    %190 = vector.broadcast %cst_185 : f32 to vector<1x32xf32>
    %191 = arith.mulf %190, %187 : vector<1x32xf32>
    %192 = arith.select %189, %187, %191 : vector<1x32xi1>, vector<1x32xf32>
    %c0_186 = arith.constant 0 : index
    %c0_187 = arith.constant 0 : index
    %193 = vector.load %arg10[%c0_186, %c0_187] : memref<1x32xf32, #tpu.memory_space<vmem>>, vector<1x32xf32>
    %194 = arith.mulf %192, %193 : vector<1x32xf32>
    %cst_188 = arith.constant dense<0.000000e+00> : vector<1xf32>
    %195 = vector.multi_reduction <add>, %194, %cst_188 [1] : vector<1x32xf32> to vector<1xf32>
    %196 = vector.shape_cast %195 : vector<1xf32> to vector<1x1xf32>
    %c0_189 = arith.constant 0 : index
    %197 = memref.load %arg11[%c0_189] : memref<1xf32, #tpu.memory_space<smem>>
    %198 = vector.broadcast %197 : f32 to vector<1x1xf32>
    %199 = arith.addf %196, %198 : vector<1x1xf32>
    %200 = arith.negf %199 : vector<1x1xf32>
    %201 = math.exp %200 : vector<1x1xf32>
    %cst_190 = arith.constant 1.000000e+00 : f32
    %202 = vector.broadcast %cst_190 : f32 to vector<1x1xf32>
    %203 = arith.addf %202, %201 : vector<1x1xf32>
    %204 = arith.divf %202, %203 : vector<1x1xf32>
    %c1_191 = arith.constant 1 : index
    %c0_192 = arith.constant 0 : index
    %205 = vector.load %arg12[%c1_191, %c0_192] : memref<2x1xf32, #tpu.memory_space<vmem>>, vector<1x1xf32>
    tpu.vector_store %arg12[%c1_191, %c0_192], %204 {strides = array<i32>} : memref<2x1xf32, #tpu.memory_space<vmem>>, vector<1x1xf32>,
    return
  }
  func.func @transform_0(%arg0: i32) -> (i32, i32, i32) {
    %c0_i32 = arith.constant 0 : i32
    %c0_i32_0 = arith.constant 0 : i32
    %c0_i32_1 = arith.constant 0 : i32
    return %arg0, %c0_i32, %c0_i32_0 : i32, i32, i32
  }
  func.func @transform_1(%arg0: i32) -> (i32, i32, i32) {
    %c0_i32 = arith.constant 0 : i32
    %c0_i32_0 = arith.constant 0 : i32
    %c0_i32_1 = arith.constant 0 : i32
    %c0_i32_2 = arith.constant 0 : i32
    return %c0_i32, %c0_i32_0, %c0_i32_1 : i32, i32, i32
  }
  func.func @transform_2(%arg0: i32) -> (i32, i32) {
    %c0_i32 = arith.constant 0 : i32
    %c0_i32_0 = arith.constant 0 : i32
    %c0_i32_1 = arith.constant 0 : i32
    return %c0_i32, %c0_i32_0 : i32, i32
  }
  func.func @transform_3(%arg0: i32) -> (i32, i32, i32) {
    %c0_i32 = arith.constant 0 : i32
    %c0_i32_0 = arith.constant 0 : i32
    %c0_i32_1 = arith.constant 0 : i32
    %c0_i32_2 = arith.constant 0 : i32
    return %c0_i32, %c0_i32_0, %c0_i32_1 : i32, i32, i32
  }
  func.func @transform_4(%arg0: i32) -> (i32, i32) {
    %c0_i32 = arith.constant 0 : i32
    %c0_i32_0 = arith.constant 0 : i32
    %c0_i32_1 = arith.constant 0 : i32
    return %c0_i32, %c0_i32_0 : i32, i32
  }
  func.func @transform_5(%arg0: i32) -> (i32, i32, i32) {
    %c0_i32 = arith.constant 0 : i32
    %c0_i32_0 = arith.constant 0 : i32
    %c0_i32_1 = arith.constant 0 : i32
    %c0_i32_2 = arith.constant 0 : i32
    return %c0_i32, %c0_i32_0, %c0_i32_1 : i32, i32, i32
  }
  func.func @transform_6(%arg0: i32) -> (i32, i32) {
    %c0_i32 = arith.constant 0 : i32
    %c0_i32_0 = arith.constant 0 : i32
    %c0_i32_1 = arith.constant 0 : i32
    return %c0_i32, %c0_i32_0 : i32, i32
  }
  func.func @transform_7(%arg0: i32) -> (i32, i32, i32) {
    %c0_i32 = arith.constant 0 : i32
    %c0_i32_0 = arith.constant 0 : i32
    %c0_i32_1 = arith.constant 0 : i32
    %c0_i32_2 = arith.constant 0 : i32
    return %c0_i32, %c0_i32_0, %c0_i32_1 : i32, i32, i32
  }
  func.func @transform_8(%arg0: i32) -> (i32, i32) {
    %c0_i32 = arith.constant 0 : i32
    %c0_i32_0 = arith.constant 0 : i32
    %c0_i32_1 = arith.constant 0 : i32
    return %c0_i32, %c0_i32_0 : i32, i32
  }
  func.func @transform_9(%arg0: i32) -> (i32, i32) {
    %c0_i32 = arith.constant 0 : i32
    %c0_i32_0 = arith.constant 0 : i32
    %c0_i32_1 = arith.constant 0 : i32
    return %c0_i32, %c0_i32_0 : i32, i32
  }
  func.func @transform_10(%arg0: i32) -> i32 {
    %c0_i32 = arith.constant 0 : i32
    %c0_i32_0 = arith.constant 0 : i32
    return %c0_i32 : i32
  }
  func.func @transform_11(%arg0: i32) -> (i32, i32) {
    %c0_i32 = arith.constant 0 : i32
    %c0_i32_0 = arith.constant 0 : i32
    return %arg0, %c0_i32 : i32, i32
  }
}

</mosaic_0001>

<llo_original>
// kernel: trade_discriminator_forward.1
$region0: #{trade_discriminator_forward.1}
  #allocation0 [shape = 'u32[]', space=smem, size = 0x4, offset = 0x4, fixed_abs, tag = 'smem constant byte address 0x4 - core index']
  #allocation1 [shape = 'u32[144,128]{1,0:T(1,128)}', space=vmem, size = 0x12000, scoped, tag = 'internal scratch']
  #allocation2 [shape = 'f32[10,4]{1,0:T(8,128)}', space=vmem, size = 0x2000, scoped, tag = 'scratch operand']
  #allocation3 [shape = 'f32[10,64]{1,0:T(8,128)}', space=vmem, size = 0x2000, scoped, tag = 'scratch operand']
  #allocation4 [shape = 'f32[6,128]{1,0:T(8,128)}', space=vmem, size = 0x1000, scoped, tag = 'scratch operand']
  #allocation5 [shape = 'f32[1]{0:T(128)S(6)}', space=smem, size = 0x200, scoped, tag = 'scoped memory for trade_discriminator_forward.1']
  %s0 = inlined_call_operand.vmem [shape: f32[2,8,4], index: 0, kind: input, shape index: {}]
  %s1 = inlined_call_operand.vmem [shape: f32[3,4,64], index: 1, kind: input, shape index: {}]
  %s2 = inlined_call_operand.vmem [shape: f32[1,64], index: 2, kind: input, shape index: {}]
  %s3 = inlined_call_operand.vmem [shape: f32[3,64,128], index: 3, kind: input, shape index: {}]
  %s4 = inlined_call_operand.vmem [shape: f32[1,128], index: 4, kind: input, shape index: {}]
  %s5 = inlined_call_operand.hbm [shape: f32[3,128,256], index: 5, kind: input, shape index: {}]
  %s6 = inlined_call_operand.vmem [shape: f32[1,256], index: 6, kind: input, shape index: {}]
  %s7 = inlined_call_operand.vmem [shape: f32[2,256,32], index: 7, kind: input, shape index: {}]
  %s8 = inlined_call_operand.vmem [shape: f32[1,32], index: 8, kind: input, shape index: {}]
  %s9 = inlined_call_operand.vmem [shape: f32[1,32], index: 9, kind: input, shape index: {}]
  %s10 = inlined_call_operand.<no memory space> [shape: f32[1], index: 10, kind: input, shape index: {}]
  %s11 = inlined_call_operand.vmem [shape: f32[2,1], index: 11, kind: output, shape index: {}]
  %s12 = sld [smem:[#allocation0]]
  $region58: #{trade_discriminator_forward.1} parent=0
    _
  %s14 = ssub.s32 1, %s12
  %s15 = scalar_select 0, %s14, %s12
  %16 = sst [smem:[#allocation5]] %s10
  $region1: #{trade_discriminator_forward.1} parent=0
    #allocation6 [shape = 'u8[393216]{0}', space=vmem, size = 0x60000, scoped, tag = 'input window, operand 5, single buffered']
    #allocation7 [shape = 's32[1]{0}', space=sflag, size = 0x4, scoped, tag = 'scoped memory for trade_discriminator_forward.1']
    %17 = vsyncpa [#allocation7], 0
    // Predicated region
    $region2: #{trade_discriminator_forward.1} parent=1 // pred_check
      _
    $region3: #{trade_discriminator_forward.1} parent=1 // pred_check_branch
      %19 = sbr.rel (0) target = $region5
    $region4: #{trade_discriminator_forward.1} parent=1 // pred_region
      _
    $region5: #{trade_discriminator_forward.1} parent=1 // pred_fallthru
      _
    // Predicated region
    $region6: #{trade_discriminator_forward.1} parent=1 // pred_check
      _
    $region7: #{trade_discriminator_forward.1} parent=1 // pred_check_branch
      %21 = sbr.rel (0) target = $region9
    $region8: #{trade_discriminator_forward.1} parent=1 // pred_region
      _
    $region9: #{trade_discriminator_forward.1} parent=1 // pred_fallthru
      _
    // Predicated region
    $region10: #{trade_discriminator_forward.1} parent=1 // pred_check
      _
    $region11: #{trade_discriminator_forward.1} parent=1 // pred_check_branch
      %23 = sbr.rel (0) target = $region13
    $region12: #{trade_discriminator_forward.1} parent=1 // pred_region
      _
    $region13: #{trade_discriminator_forward.1} parent=1 // pred_fallthru
      _
    // Predicated region
    $region14: #{trade_discriminator_forward.1} parent=1 // pred_check
      _
    $region15: #{trade_discriminator_forward.1} parent=1 // pred_check_branch
      %25 = sbr.rel (0) target = $region17
    $region16: #{trade_discriminator_forward.1} parent=1 // pred_region
      _
    $region17: #{trade_discriminator_forward.1} parent=1 // pred_fallthru
      _
    // Predicated region
    $region18: #{trade_discriminator_forward.1} parent=1 // pred_check
      _
    $region19: #{trade_discriminator_forward.1} parent=1 // pred_check_branch
      %27 = sbr.rel (0) target = $region21
    $region20: #{trade_discriminator_forward.1} parent=1 // pred_region
      _
    $region21: #{trade_discriminator_forward.1} parent=1 // pred_fallthru
      _
    // Predicated region
    $region22: #{trade_discriminator_forward.1} parent=1 // pred_check
      _
    $region23: #{trade_discriminator_forward.1} parent=1 // pred_check_branch
      %29 = sbr.rel (0) target = $region25
    $region24: #{trade_discriminator_forward.1} parent=1 // pred_region
      %s31 = ssub.s32 12288, 12288
      %32 = vsyncadd [#allocation7], %s31
      %s33 = sshll.u32 [#allocation6], 4
      %s34 = int_to_ptr.vmem [resolvable:$true] %s33
      %39 = dma.hbm_to_vmem [thread:$0]  %s5, 12288, %s34, [#allocation7], 256, 256, 16
    $region25: #{trade_discriminator_forward.1} parent=1 // pred_fallthru
      _
    // Predicated region
    $region26: #{trade_discriminator_forward.1} parent=1 // pred_check
      _
    $region27: #{trade_discriminator_forward.1} parent=1 // pred_check_branch
      %41 = sbr.rel (0) target = $region29
    $region28: #{trade_discriminator_forward.1} parent=1 // pred_region
      _
    $region29: #{trade_discriminator_forward.1} parent=1 // pred_fallthru
      _
    // Predicated region
    $region30: #{trade_discriminator_forward.1} parent=1 // pred_check
      _
    $region31: #{trade_discriminator_forward.1} parent=1 // pred_check_branch
      %43 = sbr.rel (0) target = $region33
    $region32: #{trade_discriminator_forward.1} parent=1 // pred_region
      _
    $region33: #{trade_discriminator_forward.1} parent=1 // pred_fallthru
      _
    // Predicated region
    $region34: #{trade_discriminator_forward.1} parent=1 // pred_check
      _
    $region35: #{trade_discriminator_forward.1} parent=1 // pred_check_branch
      %45 = sbr.rel (0) target = $region37
    $region36: #{trade_discriminator_forward.1} parent=1 // pred_region
      _
    $region37: #{trade_discriminator_forward.1} parent=1 // pred_fallthru
      _
    // Predicated region
    $region38: #{trade_discriminator_forward.1} parent=1 // pred_check
      _
    $region39: #{trade_discriminator_forward.1} parent=1 // pred_check_branch
      %47 = sbr.rel (0) target = $region41
    $region40: #{trade_discriminator_forward.1} parent=1 // pred_region
      _
    $region41: #{trade_discriminator_forward.1} parent=1 // pred_fallthru
      _
    // Predicated region
    $region42: #{trade_discriminator_forward.1} parent=1 // pred_check
      _
    $region43: #{trade_discriminator_forward.1} parent=1 // pred_check_branch
      %49 = sbr.rel (0) target = $region45
    $region44: #{trade_discriminator_forward.1} parent=1 // pred_region
      _
    $region45: #{trade_discriminator_forward.1} parent=1 // pred_fallthru
      _
    // Predicated region
    $region46: #{trade_discriminator_forward.1} parent=1 // pred_check
      _
    $region47: #{trade_discriminator_forward.1} parent=1 // pred_check_branch
      %51 = sbr.rel (0) target = $region49
    $region48: #{trade_discriminator_forward.1} parent=1 // pred_region
      %52 = dma.done [#allocation7], 12288
    $region49: #{trade_discriminator_forward.1} parent=1 // pred_fallthru
      _
    %vm53 = vcmask 31744
    %54 = vst.msk [vmem:[#allocation2] sm:$0xff] %vm53, 0.0
    %vm55 = vcmask 25600
    %56 = vst.msk [vmem:[#allocation2 + $0x8] sm:$0x3] %vm55, 0.0
    %vm57 = vcmask 523264
    %58 = vst.msk [vmem:[#allocation3] sm:$0xff] %vm57, 0.0
    %vm59 = vcmask 517120
    %60 = vst.msk [vmem:[#allocation3 + $0x8] sm:$0x3] %vm59, 0.0
    %61 = vst [vmem:[#allocation4] sm:$0x3f] 0.0
    %v62 = vld [vmem:[%s0] sm:$0xff]
    %63 = vst.msk [vmem:[#allocation2 + $0x1] sm:$0xff] %vm53, %v62
    %v64 = vld [vmem:[#allocation2] sm:$0xff]
    %v65 = vld [vmem:[%s1] sm:$0xf]
    %v66 = vld [vmem:[#allocation2 + $0x1] sm:$0xff]
    %s67 = scalar_lea.vmem %s1, 4
    %v68 = vld [vmem:[%s67] sm:$0xf]
    %v70 = vsel %vm53, %v66, 0
    %vm72 = vcmask 1043456
    %v74 = vsel %vm72, %v68, 0
    %76 = vmatprep.subr.mxu0 0.0
    %77 = vmatpush1.msra.mxu0 0.0
    %78 = vmatprep.subr.mxu0 0.0
    %79 = vmatpush1.msra.mxu0 0.0
    %80 = vmatprep.subr.mxu0 0.0
    %81 = vmatpush1.msra.mxu0 0.0
    %82 = vmatprep.subr.mxu0 0.0
    %83 = vmatpush1.msra.mxu0 0.0
    %84 = vmatprep.subr.mxu0 0.0
    %85 = vmatpush1.msra.mxu0 0.0
    %86 = vmatprep.subr.mxu0 0.0
    %87 = vmatpush1.msra.mxu0 0.0
    %88 = vmatprep.subr.mxu0 0.0
    %89 = vmatpush1.msra.mxu0 0.0
    %90 = vmatprep.subr.mxu0 0.0
    %91 = vmatpush1.msra.mxu0 0.0
    %92 = vmatprep.subr.mxu0 0.0
    %93 = vmatpush1.msra.mxu0 0.0
    %94 = vmatprep.subr.mxu0 0.0
    %95 = vmatpush1.msra.mxu0 0.0
    %96 = vmatprep.subr.mxu0 0.0
    %97 = vmatpush1.msra.mxu0 0.0
    %98 = vmatprep.subr.mxu0 0.0
    %99 = vmatpush1.msra.mxu0 0.0
    %100 = vmatprep.subr.mxu0 0.0
    %101 = vmatpush1.msra.mxu0 0.0
    %102 = vmatprep.subr.mxu0 0.0
    %103 = vmatpush1.msra.mxu0 0.0
    %104 = vmatprep.subr.mxu0 0.0
    %105 = vmatpush1.msra.mxu0 0.0
    %106 = vmatprep.subr.mxu0 0.0
    %107 = vmatpush1.msra.mxu0 %v74
    %108 = vmatprep.subr.mxu0 0.0
    %109 = vmatpush2.msra.mxu0 0.0
    %110 = vmatprep.subr.mxu0 0.0
    %111 = vmatpush2.msra.mxu0 0.0
    %112 = vmatprep.subr.mxu0 0.0
    %113 = vmatpush2.msra.mxu0 0.0
    %114 = vmatprep.subr.mxu0 0.0
    %115 = vmatpush2.msra.mxu0 0.0
    %116 = vmatprep.subr.mxu0 0.0
    %117 = vmatpush2.msra.mxu0 0.0
    %118 = vmatprep.subr.mxu0 0.0
    %119 = vmatpush2.msra.mxu0 0.0
    %120 = vmatprep.subr.mxu0 0.0
    %121 = vmatpush2.msra.mxu0 0.0
    %122 = vmatprep.subr.mxu0 0.0
    %123 = vmatpush2.msra.mxu0 0.0
    %124 = vmatprep.subr.mxu0 0.0
    %125 = vmatpush2.msra.mxu0 0.0
    %126 = vmatprep.subr.mxu0 0.0
    %127 = vmatpush2.msra.mxu0 0.0
    %128 = vmatprep.subr.mxu0 0.0
    %129 = vmatpush2.msra.mxu0 0.0
    %130 = vmatprep.subr.mxu0 0.0
    %131 = vmatpush2.msra.mxu0 0.0
    %132 = vmatprep.subr.mxu0 0.0
    %133 = vmatpush2.msra.mxu0 0.0
    %134 = vmatprep.subr.mxu0 0.0
    %135 = vmatpush2.msra.mxu0 0.0
    %136 = vmatprep.subr.mxu0 0.0
    %137 = vmatpush2.msra.mxu0 0.0
    %138 = vmatprep.subr.mxu0 0.0
    %139 = vmatpush2.msra.mxu0 0.0
    %140 = vmatprep.mubr.f32.mxu0 0.0
    %141 = vmatmul.mubr.f32.gmra.mxu0 %v70
    %v142 = vpop.f32.mrf.mxu0
    %v143 = vadd.f32 0.0, %v142
    %v144 = vpop.f32.mrf.mxu0
    %145 = vdwg.mxu0
    %v147 = vsel %vm53, %v64, 0
    %v150 = vsel %vm72, %v65, 0
    %152 = vmatprep.subr.mxu0 0.0
    %153 = vmatpush1.msra.mxu0 0.0
    %154 = vmatprep.subr.mxu0 0.0
    %155 = vmatpush1.msra.mxu0 0.0
    %156 = vmatprep.subr.mxu0 0.0
    %157 = vmatpush1.msra.mxu0 0.0
    %158 = vmatprep.subr.mxu0 0.0
    %159 = vmatpush1.msra.mxu0 0.0
    %160 = vmatprep.subr.mxu0 0.0
    %161 = vmatpush1.msra.mxu0 0.0
    %162 = vmatprep.subr.mxu0 0.0
    %163 = vmatpush1.msra.mxu0 0.0
    %164 = vmatprep.subr.mxu0 0.0
    %165 = vmatpush1.msra.mxu0 0.0
    %166 = vmatprep.subr.mxu0 0.0
    %167 = vmatpush1.msra.mxu0 0.0
    %168 = vmatprep.subr.mxu0 0.0
    %169 = vmatpush1.msra.mxu0 0.0
    %170 = vmatprep.subr.mxu0 0.0
    %171 = vmatpush1.msra.mxu0 0.0
    %172 = vmatprep.subr.mxu0 0.0
    %173 = vmatpush1.msra.mxu0 0.0
    %174 = vmatprep.subr.mxu0 0.0
    %175 = vmatpush1.msra.mxu0 0.0
    %176 = vmatprep.subr.mxu0 0.0
    %177 = vmatpush1.msra.mxu0 0.0
    %178 = vmatprep.subr.mxu0 0.0
    %179 = vmatpush1.msra.mxu0 0.0
    %180 = vmatprep.subr.mxu0 0.0
    %181 = vmatpush1.msra.mxu0 0.0
    %182 = vmatprep.subr.mxu0 0.0
    %183 = vmatpush1.msra.mxu0 %v150
    %184 = vmatprep.subr.mxu0 0.0
    %185 = vmatpush2.msra.mxu0 0.0
    %186 = vmatprep.subr.mxu0 0.0
    %187 = vmatpush2.msra.mxu0 0.0
    %188 = vmatprep.subr.mxu0 0.0
    %189 = vmatpush2.msra.mxu0 0.0
    %190 = vmatprep.subr.mxu0 0.0
    %191 = vmatpush2.msra.mxu0 0.0
    %192 = vmatprep.subr.mxu0 0.0
    %193 = vmatpush2.msra.mxu0 0.0
    %194 = vmatprep.subr.mxu0 0.0
    %195 = vmatpush2.msra.mxu0 0.0
    %196 = vmatprep.subr.mxu0 0.0
    %197 = vmatpush2.msra.mxu0 0.0
    %198 = vmatprep.subr.mxu0 0.0
    %199 = vmatpush2.msra.mxu0 0.0
    %200 = vmatprep.subr.mxu0 0.0
    %201 = vmatpush2.msra.mxu0 0.0
    %202 = vmatprep.subr.mxu0 0.0
    %203 = vmatpush2.msra.mxu0 0.0
    %204 = vmatprep.subr.mxu0 0.0
    %205 = vmatpush2.msra.mxu0 0.0
    %206 = vmatprep.subr.mxu0 0.0
    %207 = vmatpush2.msra.mxu0 0.0
    %208 = vmatprep.subr.mxu0 0.0
    %209 = vmatpush2.msra.mxu0 0.0
    %210 = vmatprep.subr.mxu0 0.0
    %211 = vmatpush2.msra.mxu0 0.0
    %212 = vmatprep.subr.mxu0 0.0
    %213 = vmatpush2.msra.mxu0 0.0
    %214 = vmatprep.subr.mxu0 0.0
    %215 = vmatpush2.msra.mxu0 0.0
    %216 = vmatprep.mubr.f32.mxu0 0.0
    %217 = vmatmul.mubr.f32.gmra.mxu0 %v147
    %v218 = vpop.f32.mrf.mxu0
    %v219 = vadd.f32 %v143, %v218
    %v220 = vpop.f32.mrf.mxu0
    %221 = vdwg.mxu0
    %v222 = vld [vmem:[#allocation2 + $0x2] sm:$0xff]
    %s223 = scalar_lea.vmem %s1, 8
    %v224 = vld [vmem:[%s223] sm:$0xf]
    %v226 = vsel %vm53, %v222, 0
    %v229 = vsel %vm72, %v224, 0
    %231 = vmatprep.subr.mxu0 0.0
    %232 = vmatpush1.msra.mxu0 0.0
    %233 = vmatprep.subr.mxu0 0.0
    %234 = vmatpush1.msra.mxu0 0.0
    %235 = vmatprep.subr.mxu0 0.0
    %236 = vmatpush1.msra.mxu0 0.0
    %237 = vmatprep.subr.mxu0 0.0
    %238 = vmatpush1.msra.mxu0 0.0
    %239 = vmatprep.subr.mxu0 0.0
    %240 = vmatpush1.msra.mxu0 0.0
    %241 = vmatprep.subr.mxu0 0.0
    %242 = vmatpush1.msra.mxu0 0.0
    %243 = vmatprep.subr.mxu0 0.0
    %244 = vmatpush1.msra.mxu0 0.0
    %245 = vmatprep.subr.mxu0 0.0
    %246 = vmatpush1.msra.mxu0 0.0
    %247 = vmatprep.subr.mxu0 0.0
    %248 = vmatpush1.msra.mxu0 0.0
    %249 = vmatprep.subr.mxu0 0.0
    %250 = vmatpush1.msra.mxu0 0.0
    %251 = vmatprep.subr.mxu0 0.0
    %252 = vmatpush1.msra.mxu0 0.0
    %253 = vmatprep.subr.mxu0 0.0
    %254 = vmatpush1.msra.mxu0 0.0
    %255 = vmatprep.subr.mxu0 0.0
    %256 = vmatpush1.msra.mxu0 0.0
    %257 = vmatprep.subr.mxu0 0.0
    %258 = vmatpush1.msra.mxu0 0.0
    %259 = vmatprep.subr.mxu0 0.0
    %260 = vmatpush1.msra.mxu0 0.0
    %261 = vmatprep.subr.mxu0 0.0
    %262 = vmatpush1.msra.mxu0 %v229
    %263 = vmatprep.subr.mxu0 0.0
    %264 = vmatpush2.msra.mxu0 0.0
    %265 = vmatprep.subr.mxu0 0.0
    %266 = vmatpush2.msra.mxu0 0.0
    %267 = vmatprep.subr.mxu0 0.0
    %268 = vmatpush2.msra.mxu0 0.0
    %269 = vmatprep.subr.mxu0 0.0
    %270 = vmatpush2.msra.mxu0 0.0
    %271 = vmatprep.subr.mxu0 0.0
    %272 = vmatpush2.msra.mxu0 0.0
    %273 = vmatprep.subr.mxu0 0.0
    %274 = vmatpush2.msra.mxu0 0.0
    %275 = vmatprep.subr.mxu0 0.0
    %276 = vmatpush2.msra.mxu0 0.0
    %277 = vmatprep.subr.mxu0 0.0
    %278 = vmatpush2.msra.mxu0 0.0
    %279 = vmatprep.subr.mxu0 0.0
    %280 = vmatpush2.msra.mxu0 0.0
    %281 = vmatprep.subr.mxu0 0.0
    %282 = vmatpush2.msra.mxu0 0.0
    %283 = vmatprep.subr.mxu0 0.0
    %284 = vmatpush2.msra.mxu0 0.0
    %285 = vmatprep.subr.mxu0 0.0
    %286 = vmatpush2.msra.mxu0 0.0
    %287 = vmatprep.subr.mxu0 0.0
    %288 = vmatpush2.msra.mxu0 0.0
    %289 = vmatprep.subr.mxu0 0.0
    %290 = vmatpush2.msra.mxu0 0.0
    %291 = vmatprep.subr.mxu0 0.0
    %292 = vmatpush2.msra.mxu0 0.0
    %293 = vmatprep.subr.mxu0 0.0
    %294 = vmatpush2.msra.mxu0 0.0
    %295 = vmatprep.mubr.f32.mxu0 0.0
    %296 = vmatmul.mubr.f32.gmra.mxu0 %v226
    %v297 = vpop.f32.mrf.mxu0
    %v298 = vadd.f32 0.0, %v297
    %v299 = vpop.f32.mrf.mxu0
    %300 = vdwg.mxu0
    %v301 = vadd.f32 %v219, %v298
    %v302 = vld [vmem:[%s2] sm:$0x1]
    %v304 = vlaneseq
    %v305 = vshrl.u32 %v304, 7
    %v306 = vsub.s32 0, %v305
    %v307 = vrot.slane %v302, %v306
    %v309 = vadd.f32 %v301, %v307
    %vm310 = vcmp.gt.f32.partialorder %v309, 0.0
    %v311 = vmul.f32 %v309, 0.2
    %v312 = vsel %vm310, %v309, %v311
    %313 = vst.msk [vmem:[#allocation3 + $0x1] sm:$0xff] %vm57, %v312
    %v314 = vld [vmem:[#allocation3] ss:$2 sm:$0xf]
    %v315 = vld [vmem:[%s3] sm:$0xff]
    %v316 = vld [vmem:[%s3 + $0x8] sm:$0xff]
    %v317 = vld [vmem:[%s3 + $0x10] sm:$0xff]
    %v318 = vld [vmem:[%s3 + $0x18] sm:$0xff]
    %v319 = vld [vmem:[%s3 + $0x20] sm:$0xff]
    %v320 = vld [vmem:[%s3 + $0x28] sm:$0xff]
    %v321 = vld [vmem:[%s3 + $0x30] sm:$0xff]
    %v322 = vld [vmem:[%s3 + $0x38] sm:$0xff]
    %s323 = scalar_lea.vmem [#allocation3], 1
    %v324 = vld [vmem:[%s323] ss:$2 sm:$0xf]
    %s325 = scalar_lea.vmem %s3, 64
    %v326 = vld [vmem:[%s325] sm:$0xff]
    %v327 = vld [vmem:[%s325 + $0x8] sm:$0xff]
    %v328 = vld [vmem:[%s325 + $0x10] sm:$0xff]
    %v329 = vld [vmem:[%s325 + $0x18] sm:$0xff]
    %v330 = vld [vmem:[%s325 + $0x20] sm:$0xff]
    %v331 = vld [vmem:[%s325 + $0x28] sm:$0xff]
    %v332 = vld [vmem:[%s325 + $0x30] sm:$0xff]
    %v333 = vld [vmem:[%s325 + $0x38] sm:$0xff]
    %v335 = vsel %vm57, %v324, 0
    %337 = vmatprep.subr.mxu0 0.0
    %338 = vmatpush1.msra.mxu0 0.0
    %339 = vmatprep.subr.mxu0 0.0
    %340 = vmatpush1.msra.mxu0 0.0
    %341 = vmatprep.subr.mxu0 0.0
    %342 = vmatpush1.msra.mxu0 0.0
    %343 = vmatprep.subr.mxu0 0.0
    %344 = vmatpush1.msra.mxu0 0.0
    %345 = vmatprep.subr.mxu0 0.0
    %346 = vmatpush1.msra.mxu0 0.0
    %347 = vmatprep.subr.mxu0 0.0
    %348 = vmatpush1.msra.mxu0 0.0
    %349 = vmatprep.subr.mxu0 0.0
    %350 = vmatpush1.msra.mxu0 0.0
    %351 = vmatprep.subr.mxu0 0.0
    %352 = vmatpush1.msra.mxu0 0.0
    %353 = vmatprep.subr.mxu0 0.0
    %354 = vmatpush1.msra.mxu0 %v333
    %355 = vmatprep.subr.mxu0 0.0
    %356 = vmatpush1.msra.mxu0 %v332
    %357 = vmatprep.subr.mxu0 0.0
    %358 = vmatpush1.msra.mxu0 %v331
    %359 = vmatprep.subr.mxu0 0.0
    %360 = vmatpush1.msra.mxu0 %v330
    %361 = vmatprep.subr.mxu0 0.0
    %362 = vmatpush1.msra.mxu0 %v329
    %363 = vmatprep.subr.mxu0 0.0
    %364 = vmatpush1.msra.mxu0 %v328
    %365 = vmatprep.subr.mxu0 0.0
    %366 = vmatpush1.msra.mxu0 %v327
    %367 = vmatprep.subr.mxu0 0.0
    %368 = vmatpush1.msra.mxu0 %v326
    %369 = vmatprep.subr.mxu0 0.0
    %370 = vmatpush2.msra.mxu0 0.0
    %371 = vmatprep.subr.mxu0 0.0
    %372 = vmatpush2.msra.mxu0 0.0
    %373 = vmatprep.subr.mxu0 0.0
    %374 = vmatpush2.msra.mxu0 0.0
    %375 = vmatprep.subr.mxu0 0.0
    %376 = vmatpush2.msra.mxu0 0.0
    %377 = vmatprep.subr.mxu0 0.0
    %378 = vmatpush2.msra.mxu0 0.0
    %379 = vmatprep.subr.mxu0 0.0
    %380 = vmatpush2.msra.mxu0 0.0
    %381 = vmatprep.subr.mxu0 0.0
    %382 = vmatpush2.msra.mxu0 0.0
    %383 = vmatprep.subr.mxu0 0.0
    %384 = vmatpush2.msra.mxu0 0.0
    %385 = vmatprep.subr.mxu0 0.0
    %386 = vmatpush2.msra.mxu0 0.0
    %387 = vmatprep.subr.mxu0 0.0
    %388 = vmatpush2.msra.mxu0 0.0
    %389 = vmatprep.subr.mxu0 0.0
    %390 = vmatpush2.msra.mxu0 0.0
    %391 = vmatprep.subr.mxu0 0.0
    %392 = vmatpush2.msra.mxu0 0.0
    %393 = vmatprep.subr.mxu0 0.0
    %394 = vmatpush2.msra.mxu0 0.0
    %395 = vmatprep.subr.mxu0 0.0
    %396 = vmatpush2.msra.mxu0 0.0
    %397 = vmatprep.subr.mxu0 0.0
    %398 = vmatpush2.msra.mxu0 0.0
    %399 = vmatprep.subr.mxu0 0.0
    %400 = vmatpush2.msra.mxu0 0.0
    %401 = vmatprep.mubr.f32.mxu0 0.0
    %402 = vmatmul.mubr.f32.gmra.mxu0 %v335
    %v403 = vpop.f32.mrf.mxu0
    %v404 = vadd.f32 0.0, %v403
    %v405 = vpop.f32.mrf.mxu0
    %406 = vdwg.mxu0
    %v408 = vsel %vm57, %v314, 0
    %410 = vmatprep.subr.mxu0 0.0
    %411 = vmatpush1.msra.mxu0 0.0
    %412 = vmatprep.subr.mxu0 0.0
    %413 = vmatpush1.msra.mxu0 0.0
    %414 = vmatprep.subr.mxu0 0.0
    %415 = vmatpush1.msra.mxu0 0.0
    %416 = vmatprep.subr.mxu0 0.0
    %417 = vmatpush1.msra.mxu0 0.0
    %418 = vmatprep.subr.mxu0 0.0
    %419 = vmatpush1.msra.mxu0 0.0
    %420 = vmatprep.subr.mxu0 0.0
    %421 = vmatpush1.msra.mxu0 0.0
    %422 = vmatprep.subr.mxu0 0.0
    %423 = vmatpush1.msra.mxu0 0.0
    %424 = vmatprep.subr.mxu0 0.0
    %425 = vmatpush1.msra.mxu0 0.0
    %426 = vmatprep.subr.mxu0 0.0
    %427 = vmatpush1.msra.mxu0 %v322
    %428 = vmatprep.subr.mxu0 0.0
    %429 = vmatpush1.msra.mxu0 %v321
    %430 = vmatprep.subr.mxu0 0.0
    %431 = vmatpush1.msra.mxu0 %v320
    %432 = vmatprep.subr.mxu0 0.0
    %433 = vmatpush1.msra.mxu0 %v319
    %434 = vmatprep.subr.mxu0 0.0
    %435 = vmatpush1.msra.mxu0 %v318
    %436 = vmatprep.subr.mxu0 0.0
    %437 = vmatpush1.msra.mxu0 %v317
    %438 = vmatprep.subr.mxu0 0.0
    %439 = vmatpush1.msra.mxu0 %v316
    %440 = vmatprep.subr.mxu0 0.0
    %441 = vmatpush1.msra.mxu0 %v315
    %442 = vmatprep.subr.mxu0 0.0
    %443 = vmatpush2.msra.mxu0 0.0
    %444 = vmatprep.subr.mxu0 0.0
    %445 = vmatpush2.msra.mxu0 0.0
    %446 = vmatprep.subr.mxu0 0.0
    %447 = vmatpush2.msra.mxu0 0.0
    %448 = vmatprep.subr.mxu0 0.0
    %449 = vmatpush2.msra.mxu0 0.0
    %450 = vmatprep.subr.mxu0 0.0
    %451 = vmatpush2.msra.mxu0 0.0
    %452 = vmatprep.subr.mxu0 0.0
    %453 = vmatpush2.msra.mxu0 0.0
    %454 = vmatprep.subr.mxu0 0.0
    %455 = vmatpush2.msra.mxu0 0.0
    %456 = vmatprep.subr.mxu0 0.0
    %457 = vmatpush2.msra.mxu0 0.0
    %458 = vmatprep.subr.mxu0 0.0
    %459 = vmatpush2.msra.mxu0 0.0
    %460 = vmatprep.subr.mxu0 0.0
    %461 = vmatpush2.msra.mxu0 0.0
    %462 = vmatprep.subr.mxu0 0.0
    %463 = vmatpush2.msra.mxu0 0.0
    %464 = vmatprep.subr.mxu0 0.0
    %465 = vmatpush2.msra.mxu0 0.0
    %466 = vmatprep.subr.mxu0 0.0
    %467 = vmatpush2.msra.mxu0 0.0
    %468 = vmatprep.subr.mxu0 0.0
    %469 = vmatpush2.msra.mxu0 0.0
    %470 = vmatprep.subr.mxu0 0.0
    %471 = vmatpush2.msra.mxu0 0.0
    %472 = vmatprep.subr.mxu0 0.0
    %473 = vmatpush2.msra.mxu0 0.0
    %474 = vmatprep.mubr.f32.mxu0 0.0
    %475 = vmatmul.mubr.f32.gmra.mxu0 %v408
    %v476 = vpop.f32.mrf.mxu0
    %v477 = vadd.f32 %v404, %v476
    %v478 = vpop.f32.mrf.mxu0
    %479 = vdwg.mxu0
    %s480 = scalar_lea.vmem [#allocation3], 2
    %v481 = vld [vmem:[%s480] ss:$2 sm:$0xf]
    %s482 = scalar_lea.vmem %s3, 128
    %v483 = vld [vmem:[%s482] sm:$0xff]
    %v484 = vld [vmem:[%s482 + $0x8] sm:$0xff]
    %v485 = vld [vmem:[%s482 + $0x10] sm:$0xff]
    %v486 = vld [vmem:[%s482 + $0x18] sm:$0xff]
    %v487 = vld [vmem:[%s482 + $0x20] sm:$0xff]
    %v488 = vld [vmem:[%s482 + $0x28] sm:$0xff]
    %v489 = vld [vmem:[%s482 + $0x30] sm:$0xff]
    %v490 = vld [vmem:[%s482 + $0x38] sm:$0xff]
    %v492 = vsel %vm57, %v481, 0
    %494 = vmatprep.subr.mxu0 0.0
    %495 = vmatpush1.msra.mxu0 0.0
    %496 = vmatprep.subr.mxu0 0.0
    %497 = vmatpush1.msra.mxu0 0.0
    %498 = vmatprep.subr.mxu0 0.0
    %499 = vmatpush1.msra.mxu0 0.0
    %500 = vmatprep.subr.mxu0 0.0
    %501 = vmatpush1.msra.mxu0 0.0
    %502 = vmatprep.subr.mxu0 0.0
    %503 = vmatpush1.msra.mxu0 0.0
    %504 = vmatprep.subr.mxu0 0.0
    %505 = vmatpush1.msra.mxu0 0.0
    %506 = vmatprep.subr.mxu0 0.0
    %507 = vmatpush1.msra.mxu0 0.0
    %508 = vmatprep.subr.mxu0 0.0
    %509 = vmatpush1.msra.mxu0 0.0
    %510 = vmatprep.subr.mxu0 0.0
    %511 = vmatpush1.msra.mxu0 %v490
    %512 = vmatprep.subr.mxu0 0.0
    %513 = vmatpush1.msra.mxu0 %v489
    %514 = vmatprep.subr.mxu0 0.0
    %515 = vmatpush1.msra.mxu0 %v488
    %516 = vmatprep.subr.mxu0 0.0
    %517 = vmatpush1.msra.mxu0 %v487
    %518 = vmatprep.subr.mxu0 0.0
    %519 = vmatpush1.msra.mxu0 %v486
    %520 = vmatprep.subr.mxu0 0.0
    %521 = vmatpush1.msra.mxu0 %v485
    %522 = vmatprep.subr.mxu0 0.0
    %523 = vmatpush1.msra.mxu0 %v484
    %524 = vmatprep.subr.mxu0 0.0
    %525 = vmatpush1.msra.mxu0 %v483
    %526 = vmatprep.subr.mxu0 0.0
    %527 = vmatpush2.msra.mxu0 0.0
    %528 = vmatprep.subr.mxu0 0.0
    %529 = vmatpush2.msra.mxu0 0.0
    %530 = vmatprep.subr.mxu0 0.0
    %531 = vmatpush2.msra.mxu0 0.0
    %532 = vmatprep.subr.mxu0 0.0
    %533 = vmatpush2.msra.mxu0 0.0
    %534 = vmatprep.subr.mxu0 0.0
    %535 = vmatpush2.msra.mxu0 0.0
    %536 = vmatprep.subr.mxu0 0.0
    %537 = vmatpush2.msra.mxu0 0.0
    %538 = vmatprep.subr.mxu0 0.0
    %539 = vmatpush2.msra.mxu0 0.0
    %540 = vmatprep.subr.mxu0 0.0
    %541 = vmatpush2.msra.mxu0 0.0
    %542 = vmatprep.subr.mxu0 0.0
    %543 = vmatpush2.msra.mxu0 0.0
    %544 = vmatprep.subr.mxu0 0.0
    %545 = vmatpush2.msra.mxu0 0.0
    %546 = vmatprep.subr.mxu0 0.0
    %547 = vmatpush2.msra.mxu0 0.0
    %548 = vmatprep.subr.mxu0 0.0
    %549 = vmatpush2.msra.mxu0 0.0
    %550 = vmatprep.subr.mxu0 0.0
    %551 = vmatpush2.msra.mxu0 0.0
    %552 = vmatprep.subr.mxu0 0.0
    %553 = vmatpush2.msra.mxu0 0.0
    %554 = vmatprep.subr.mxu0 0.0
    %555 = vmatpush2.msra.mxu0 0.0
    %556 = vmatprep.subr.mxu0 0.0
    %557 = vmatpush2.msra.mxu0 0.0
    %558 = vmatprep.mubr.f32.mxu0 0.0
    %559 = vmatmul.mubr.f32.gmra.mxu0 %v492
    %v560 = vpop.f32.mrf.mxu0
    %v561 = vadd.f32 0.0, %v560
    %v562 = vpop.f32.mrf.mxu0
    %563 = vdwg.mxu0
    %v564 = vadd.f32 %v477, %v561
    %v565 = vld [vmem:[%s4] sm:$0x1]
    %v567 = vlaneseq
    %v568 = vshrl.u32 %v567, 7
    %v569 = vsub.s32 0, %v568
    %v570 = vrot.slane %v565, %v569
    %v572 = vadd.f32 %v564, %v570
    %vm573 = vcmp.gt.f32.partialorder %v572, 0.0
    %v574 = vmul.f32 %v572, 0.2
    %v575 = vsel %vm573, %v572, %v574
    %576 = vst [vmem:[#allocation4 + $0x1] sm:$0xf] %v575
    %v577 = vld [vmem:[#allocation4] ss:$2 sm:$0x3]
    %v578 = vld [vmem:[#allocation6] sm:$0xff]
    %v579 = vld [vmem:[#allocation6 + $0x8] sm:$0xff]
    %v580 = vld [vmem:[#allocation6 + $0x10] sm:$0xff]
    %v581 = vld [vmem:[#allocation6 + $0x18] sm:$0xff]
    %v582 = vld [vmem:[#allocation6 + $0x20] sm:$0xff]
    %v583 = vld [vmem:[#allocation6 + $0x28] sm:$0xff]
    %v584 = vld [vmem:[#allocation6 + $0x30] sm:$0xff]
    %v585 = vld [vmem:[#allocation6 + $0x38] sm:$0xff]
    %v586 = vld [vmem:[#allocation6 + $0x40] sm:$0xff]
    %v587 = vld [vmem:[#allocation6 + $0x48] sm:$0xff]
    %v588 = vld [vmem:[#allocation6 + $0x50] sm:$0xff]
    %v589 = vld [vmem:[#allocation6 + $0x58] sm:$0xff]
    %v590 = vld [vmem:[#allocation6 + $0x60] sm:$0xff]
    %v591 = vld [vmem:[#allocation6 + $0x68] sm:$0xff]
    %v592 = vld [vmem:[#allocation6 + $0x70] sm:$0xff]
    %v593 = vld [vmem:[#allocation6 + $0x78] sm:$0xff]
    %v594 = vld [vmem:[#allocation6 + $0x80] sm:$0xff]
    %v595 = vld [vmem:[#allocation6 + $0x88] sm:$0xff]
    %v596 = vld [vmem:[#allocation6 + $0x90] sm:$0xff]
    %v597 = vld [vmem:[#allocation6 + $0x98] sm:$0xff]
    %v598 = vld [vmem:[#allocation6 + $0xa0] sm:$0xff]
    %v599 = vld [vmem:[#allocation6 + $0xa8] sm:$0xff]
    %v600 = vld [vmem:[#allocation6 + $0xb0] sm:$0xff]
    %v601 = vld [vmem:[#allocation6 + $0xb8] sm:$0xff]
    %v602 = vld [vmem:[#allocation6 + $0xc0] sm:$0xff]
    %v603 = vld [vmem:[#allocation6 + $0xc8] sm:$0xff]
    %v604 = vld [vmem:[#allocation6 + $0xd0] sm:$0xff]
    %v605 = vld [vmem:[#allocation6 + $0xd8] sm:$0xff]
    %v606 = vld [vmem:[#allocation6 + $0xe0] sm:$0xff]
    %v607 = vld [vmem:[#allocation6 + $0xe8] sm:$0xff]
    %v608 = vld [vmem:[#allocation6 + $0xf0] sm:$0xff]
    %v609 = vld [vmem:[#allocation6 + $0xf8] sm:$0xff]
    %s610 = scalar_lea.vmem [#allocation4], 1
    %v611 = vld [vmem:[%s610] ss:$2 sm:$0x3]
    %s612 = scalar_lea.vmem [#allocation6], 256
    %v613 = vld [vmem:[%s612] sm:$0xff]
    %v614 = vld [vmem:[%s612 + $0x8] sm:$0xff]
    %v615 = vld [vmem:[%s612 + $0x10] sm:$0xff]
    %v616 = vld [vmem:[%s612 + $0x18] sm:$0xff]
    %v617 = vld [vmem:[%s612 + $0x20] sm:$0xff]
    %v618 = vld [vmem:[%s612 + $0x28] sm:$0xff]
    %v619 = vld [vmem:[%s612 + $0x30] sm:$0xff]
    %v620 = vld [vmem:[%s612 + $0x38] sm:$0xff]
    %v621 = vld [vmem:[%s612 + $0x40] sm:$0xff]
    %v622 = vld [vmem:[%s612 + $0x48] sm:$0xff]
    %v623 = vld [vmem:[%s612 + $0x50] sm:$0xff]
    %v624 = vld [vmem:[%s612 + $0x58] sm:$0xff]
    %v625 = vld [vmem:[%s612 + $0x60] sm:$0xff]
    %v626 = vld [vmem:[%s612 + $0x68] sm:$0xff]
    %v627 = vld [vmem:[%s612 + $0x70] sm:$0xff]
    %v628 = vld [vmem:[%s612 + $0x78] sm:$0xff]
    %v629 = vld [vmem:[%s612 + $0x80] sm:$0xff]
    %v630 = vld [vmem:[%s612 + $0x88] sm:$0xff]
    %v631 = vld [vmem:[%s612 + $0x90] sm:$0xff]
    %v632 = vld [vmem:[%s612 + $0x98] sm:$0xff]
    %v633 = vld [vmem:[%s612 + $0xa0] sm:$0xff]
    %v634 = vld [vmem:[%s612 + $0xa8] sm:$0xff]
    %v635 = vld [vmem:[%s612 + $0xb0] sm:$0xff]
    %v636 = vld [vmem:[%s612 + $0xb8] sm:$0xff]
    %v637 = vld [vmem:[%s612 + $0xc0] sm:$0xff]
    %v638 = vld [vmem:[%s612 + $0xc8] sm:$0xff]
    %v639 = vld [vmem:[%s612 + $0xd0] sm:$0xff]
    %v640 = vld [vmem:[%s612 + $0xd8] sm:$0xff]
    %v641 = vld [vmem:[%s612 + $0xe0] sm:$0xff]
    %v642 = vld [vmem:[%s612 + $0xe8] sm:$0xff]
    %v643 = vld [vmem:[%s612 + $0xf0] sm:$0xff]
    %v644 = vld [vmem:[%s612 + $0xf8] sm:$0xff]
    %645 = vmatprep.subr.mxu0 %v644
    %646 = vmatpush1.msra.mxu0 %v643
    %647 = vmatprep.subr.mxu0 %v642
    %648 = vmatpush1.msra.mxu0 %v641
    %649 = vmatprep.subr.mxu0 %v640
    %650 = vmatpush1.msra.mxu0 %v639
    %651 = vmatprep.subr.mxu0 %v638
    %652 = vmatpush1.msra.mxu0 %v637
    %653 = vmatprep.subr.mxu0 %v636
    %654 = vmatpush1.msra.mxu0 %v635
    %655 = vmatprep.subr.mxu0 %v634
    %656 = vmatpush1.msra.mxu0 %v633
    %657 = vmatprep.subr.mxu0 %v632
    %658 = vmatpush1.msra.mxu0 %v631
    %659 = vmatprep.subr.mxu0 %v630
    %660 = vmatpush1.msra.mxu0 %v629
    %661 = vmatprep.subr.mxu0 %v628
    %662 = vmatpush1.msra.mxu0 %v627
    %663 = vmatprep.subr.mxu0 %v626
    %664 = vmatpush1.msra.mxu0 %v625
    %665 = vmatprep.subr.mxu0 %v624
    %666 = vmatpush1.msra.mxu0 %v623
    %667 = vmatprep.subr.mxu0 %v622
    %668 = vmatpush1.msra.mxu0 %v621
    %669 = vmatprep.subr.mxu0 %v620
    %670 = vmatpush1.msra.mxu0 %v619
    %671 = vmatprep.subr.mxu0 %v618
    %672 = vmatpush1.msra.mxu0 %v617
    %673 = vmatprep.subr.mxu0 %v616
    %674 = vmatpush1.msra.mxu0 %v615
    %675 = vmatprep.subr.mxu0 %v614
    %676 = vmatpush1.msra.mxu0 %v613
    %677 = vmatprep.subr.mxu0 0.0
    %678 = vmatpush2.msra.mxu0 0.0
    %679 = vmatprep.subr.mxu0 0.0
    %680 = vmatpush2.msra.mxu0 0.0
    %681 = vmatprep.subr.mxu0 0.0
    %682 = vmatpush2.msra.mxu0 0.0
    %683 = vmatprep.subr.mxu0 0.0
    %684 = vmatpush2.msra.mxu0 0.0
    %685 = vmatprep.subr.mxu0 0.0
    %686 = vmatpush2.msra.mxu0 0.0
    %687 = vmatprep.subr.mxu0 0.0
    %688 = vmatpush2.msra.mxu0 0.0
    %689 = vmatprep.subr.mxu0 0.0
    %690 = vmatpush2.msra.mxu0 0.0
    %691 = vmatprep.subr.mxu0 0.0
    %692 = vmatpush2.msra.mxu0 0.0
    %693 = vmatprep.subr.mxu0 0.0
    %694 = vmatpush2.msra.mxu0 0.0
    %695 = vmatprep.subr.mxu0 0.0
    %696 = vmatpush2.msra.mxu0 0.0
    %697 = vmatprep.subr.mxu0 0.0
    %698 = vmatpush2.msra.mxu0 0.0
    %699 = vmatprep.subr.mxu0 0.0
    %700 = vmatpush2.msra.mxu0 0.0
    %701 = vmatprep.subr.mxu0 0.0
    %702 = vmatpush2.msra.mxu0 0.0
    %703 = vmatprep.subr.mxu0 0.0
    %704 = vmatpush2.msra.mxu0 0.0
    %705 = vmatprep.subr.mxu0 0.0
    %706 = vmatpush2.msra.mxu0 0.0
    %707 = vmatprep.subr.mxu0 0.0
    %708 = vmatpush2.msra.mxu0 0.0
    %709 = vmatprep.mubr.f32.mxu0 0.0
    %710 = vmatmul.mubr.f32.gmra.mxu0 %v611
    %v711 = vpop.f32.mrf.mxu0
    %v712 = vadd.f32 0.0, %v711
    %v713 = vpop.f32.mrf.mxu0
    %v714 = vadd.f32 0.0, %v713
    %715 = vdwg.mxu0
    %716 = vmatprep.subr.mxu0 %v609
    %717 = vmatpush1.msra.mxu0 %v608
    %718 = vmatprep.subr.mxu0 %v607
    %719 = vmatpush1.msra.mxu0 %v606
    %720 = vmatprep.subr.mxu0 %v605
    %721 = vmatpush1.msra.mxu0 %v604
    %722 = vmatprep.subr.mxu0 %v603
    %723 = vmatpush1.msra.mxu0 %v602
    %724 = vmatprep.subr.mxu0 %v601
    %725 = vmatpush1.msra.mxu0 %v600
    %726 = vmatprep.subr.mxu0 %v599
    %727 = vmatpush1.msra.mxu0 %v598
    %728 = vmatprep.subr.mxu0 %v597
    %729 = vmatpush1.msra.mxu0 %v596
    %730 = vmatprep.subr.mxu0 %v595
    %731 = vmatpush1.msra.mxu0 %v594
    %732 = vmatprep.subr.mxu0 %v593
    %733 = vmatpush1.msra.mxu0 %v592
    %734 = vmatprep.subr.mxu0 %v591
    %735 = vmatpush1.msra.mxu0 %v590
    %736 = vmatprep.subr.mxu0 %v589
    %737 = vmatpush1.msra.mxu0 %v588
    %738 = vmatprep.subr.mxu0 %v587
    %739 = vmatpush1.msra.mxu0 %v586
    %740 = vmatprep.subr.mxu0 %v585
    %741 = vmatpush1.msra.mxu0 %v584
    %742 = vmatprep.subr.mxu0 %v583
    %743 = vmatpush1.msra.mxu0 %v582
    %744 = vmatprep.subr.mxu0 %v581
    %745 = vmatpush1.msra.mxu0 %v580
    %746 = vmatprep.subr.mxu0 %v579
    %747 = vmatpush1.msra.mxu0 %v578
    %748 = vmatprep.subr.mxu0 0.0
    %749 = vmatpush2.msra.mxu0 0.0
    %750 = vmatprep.subr.mxu0 0.0
    %751 = vmatpush2.msra.mxu0 0.0
    %752 = vmatprep.subr.mxu0 0.0
    %753 = vmatpush2.msra.mxu0 0.0
    %754 = vmatprep.subr.mxu0 0.0
    %755 = vmatpush2.msra.mxu0 0.0
    %756 = vmatprep.subr.mxu0 0.0
    %757 = vmatpush2.msra.mxu0 0.0
    %758 = vmatprep.subr.mxu0 0.0
    %759 = vmatpush2.msra.mxu0 0.0
    %760 = vmatprep.subr.mxu0 0.0
    %761 = vmatpush2.msra.mxu0 0.0
    %762 = vmatprep.subr.mxu0 0.0
    %763 = vmatpush2.msra.mxu0 0.0
    %764 = vmatprep.subr.mxu0 0.0
    %765 = vmatpush2.msra.mxu0 0.0
    %766 = vmatprep.subr.mxu0 0.0
    %767 = vmatpush2.msra.mxu0 0.0
    %768 = vmatprep.subr.mxu0 0.0
    %769 = vmatpush2.msra.mxu0 0.0
    %770 = vmatprep.subr.mxu0 0.0
    %771 = vmatpush2.msra.mxu0 0.0
    %772 = vmatprep.subr.mxu0 0.0
    %773 = vmatpush2.msra.mxu0 0.0
    %774 = vmatprep.subr.mxu0 0.0
    %775 = vmatpush2.msra.mxu0 0.0
    %776 = vmatprep.subr.mxu0 0.0
    %777 = vmatpush2.msra.mxu0 0.0
    %778 = vmatprep.subr.mxu0 0.0
    %779 = vmatpush2.msra.mxu0 0.0
    %780 = vmatprep.mubr.f32.mxu0 0.0
    %781 = vmatmul.mubr.f32.gmra.mxu0 %v577
    %v782 = vpop.f32.mrf.mxu0
    %v783 = vadd.f32 %v712, %v782
    %v784 = vpop.f32.mrf.mxu0
    %v785 = vadd.f32 %v714, %v784
    %786 = vdwg.mxu0
    %s787 = scalar_lea.vmem [#allocation4], 2
    %v788 = vld [vmem:[%s787] ss:$2 sm:$0x3]
    %s789 = scalar_lea.vmem [#allocation6], 512
    %v790 = vld [vmem:[%s789] sm:$0xff]
    %v791 = vld [vmem:[%s789 + $0x8] sm:$0xff]
    %v792 = vld [vmem:[%s789 + $0x10] sm:$0xff]
    %v793 = vld [vmem:[%s789 + $0x18] sm:$0xff]
    %v794 = vld [vmem:[%s789 + $0x20] sm:$0xff]
    %v795 = vld [vmem:[%s789 + $0x28] sm:$0xff]
    %v796 = vld [vmem:[%s789 + $0x30] sm:$0xff]
    %v797 = vld [vmem:[%s789 + $0x38] sm:$0xff]
    %v798 = vld [vmem:[%s789 + $0x40] sm:$0xff]
    %v799 = vld [vmem:[%s789 + $0x48] sm:$0xff]
    %v800 = vld [vmem:[%s789 + $0x50] sm:$0xff]
    %v801 = vld [vmem:[%s789 + $0x58] sm:$0xff]
    %v802 = vld [vmem:[%s789 + $0x60] sm:$0xff]
    %v803 = vld [vmem:[%s789 + $0x68] sm:$0xff]
    %v804 = vld [vmem:[%s789 + $0x70] sm:$0xff]
    %v805 = vld [vmem:[%s789 + $0x78] sm:$0xff]
    %v806 = vld [vmem:[%s789 + $0x80] sm:$0xff]
    %v807 = vld [vmem:[%s789 + $0x88] sm:$0xff]
    %v808 = vld [vmem:[%s789 + $0x90] sm:$0xff]
    %v809 = vld [vmem:[%s789 + $0x98] sm:$0xff]
    %v810 = vld [vmem:[%s789 + $0xa0] sm:$0xff]
    %v811 = vld [vmem:[%s789 + $0xa8] sm:$0xff]
    %v812 = vld [vmem:[%s789 + $0xb0] sm:$0xff]
    %v813 = vld [vmem:[%s789 + $0xb8] sm:$0xff]
    %v814 = vld [vmem:[%s789 + $0xc0] sm:$0xff]
    %v815 = vld [vmem:[%s789 + $0xc8] sm:$0xff]
    %v816 = vld [vmem:[%s789 + $0xd0] sm:$0xff]
    %v817 = vld [vmem:[%s789 + $0xd8] sm:$0xff]
    %v818 = vld [vmem:[%s789 + $0xe0] sm:$0xff]
    %v819 = vld [vmem:[%s789 + $0xe8] sm:$0xff]
    %v820 = vld [vmem:[%s789 + $0xf0] sm:$0xff]
    %v821 = vld [vmem:[%s789 + $0xf8] sm:$0xff]
    %822 = vmatprep.subr.mxu0 %v821
    %823 = vmatpush1.msra.mxu0 %v820
    %824 = vmatprep.subr.mxu0 %v819
    %825 = vmatpush1.msra.mxu0 %v818
    %826 = vmatprep.subr.mxu0 %v817
    %827 = vmatpush1.msra.mxu0 %v816
    %828 = vmatprep.subr.mxu0 %v815
    %829 = vmatpush1.msra.mxu0 %v814
    %830 = vmatprep.subr.mxu0 %v813
    %831 = vmatpush1.msra.mxu0 %v812
    %832 = vmatprep.subr.mxu0 %v811
    %833 = vmatpush1.msra.mxu0 %v810
    %834 = vmatprep.subr.mxu0 %v809
    %835 = vmatpush1.msra.mxu0 %v808
    %836 = vmatprep.subr.mxu0 %v807
    %837 = vmatpush1.msra.mxu0 %v806
    %838 = vmatprep.subr.mxu0 %v805
    %839 = vmatpush1.msra.mxu0 %v804
    %840 = vmatprep.subr.mxu0 %v803
    %841 = vmatpush1.msra.mxu0 %v802
    %842 = vmatprep.subr.mxu0 %v801
    %843 = vmatpush1.msra.mxu0 %v800
    %844 = vmatprep.subr.mxu0 %v799
    %845 = vmatpush1.msra.mxu0 %v798
    %846 = vmatprep.subr.mxu0 %v797
    %847 = vmatpush1.msra.mxu0 %v796
    %848 = vmatprep.subr.mxu0 %v795
    %849 = vmatpush1.msra.mxu0 %v794
    %850 = vmatprep.subr.mxu0 %v793
    %851 = vmatpush1.msra.mxu0 %v792
    %852 = vmatprep.subr.mxu0 %v791
    %853 = vmatpush1.msra.mxu0 %v790
    %854 = vmatprep.subr.mxu0 0.0
    %855 = vmatpush2.msra.mxu0 0.0
    %856 = vmatprep.subr.mxu0 0.0
    %857 = vmatpush2.msra.mxu0 0.0
    %858 = vmatprep.subr.mxu0 0.0
    %859 = vmatpush2.msra.mxu0 0.0
    %860 = vmatprep.subr.mxu0 0.0
    %861 = vmatpush2.msra.mxu0 0.0
    %862 = vmatprep.subr.mxu0 0.0
    %863 = vmatpush2.msra.mxu0 0.0
    %864 = vmatprep.subr.mxu0 0.0
    %865 = vmatpush2.msra.mxu0 0.0
    %866 = vmatprep.subr.mxu0 0.0
    %867 = vmatpush2.msra.mxu0 0.0
    %868 = vmatprep.subr.mxu0 0.0
    %869 = vmatpush2.msra.mxu0 0.0
    %870 = vmatprep.subr.mxu0 0.0
    %871 = vmatpush2.msra.mxu0 0.0
    %872 = vmatprep.subr.mxu0 0.0
    %873 = vmatpush2.msra.mxu0 0.0
    %874 = vmatprep.subr.mxu0 0.0
    %875 = vmatpush2.msra.mxu0 0.0
    %876 = vmatprep.subr.mxu0 0.0
    %877 = vmatpush2.msra.mxu0 0.0
    %878 = vmatprep.subr.mxu0 0.0
    %879 = vmatpush2.msra.mxu0 0.0
    %880 = vmatprep.subr.mxu0 0.0
    %881 = vmatpush2.msra.mxu0 0.0
    %882 = vmatprep.subr.mxu0 0.0
    %883 = vmatpush2.msra.mxu0 0.0
    %884 = vmatprep.subr.mxu0 0.0
    %885 = vmatpush2.msra.mxu0 0.0
    %886 = vmatprep.mubr.f32.mxu0 0.0
    %887 = vmatmul.mubr.f32.gmra.mxu0 %v788
    %v888 = vpop.f32.mrf.mxu0
    %v889 = vadd.f32 0.0, %v888
    %v890 = vpop.f32.mrf.mxu0
    %v891 = vadd.f32 0.0, %v890
    %892 = vdwg.mxu0
    %v893 = vadd.f32 %v783, %v889
    %v894 = vadd.f32 %v785, %v891
    %v895 = vld [vmem:[%s6] sm:$0x3]
    %v897 = vlaneseq
    %v898 = vshrl.u32 %v897, 7
    %v899 = vsub.s32 0, %v898
    %v900 = vrot.slane %v895, %v899
    %v901 = vlaneseq
    %v902 = vshrl.u32 %v901, 7
    %v903 = vsub.s32 1, %v902
    %v904 = vrot.slane %v895, %v903
    %v907 = vadd.f32 %v893, %v900
    %v908 = vadd.f32 %v894, %v904
    %vm909 = vcmp.gt.f32.partialorder %v907, 0.0
    %vm910 = vcmp.gt.f32.partialorder %v908, 0.0
    %v911 = vmul.f32 %v907, 0.2
    %v912 = vmul.f32 %v908, 0.2
    %v913 = vsel %vm909, %v907, %v911
    %v914 = vsel %vm910, %v908, %v912
    %v915 = vld [vmem:[%s7] sm:$0xff]
    %v916 = vld [vmem:[%s7 + $0x8] sm:$0xff]
    %v917 = vld [vmem:[%s7 + $0x10] sm:$0xff]
    %v918 = vld [vmem:[%s7 + $0x18] sm:$0xff]
    %v919 = vld [vmem:[%s7 + $0x20] sm:$0xff]
    %v920 = vld [vmem:[%s7 + $0x28] sm:$0xff]
    %v921 = vld [vmem:[%s7 + $0x30] sm:$0xff]
    %v922 = vld [vmem:[%s7 + $0x38] sm:$0xff]
    %v923 = vld [vmem:[%s7 + $0x40] sm:$0xff]
    %v924 = vld [vmem:[%s7 + $0x48] sm:$0xff]
    %v925 = vld [vmem:[%s7 + $0x50] sm:$0xff]
    %v926 = vld [vmem:[%s7 + $0x58] sm:$0xff]
    %v927 = vld [vmem:[%s7 + $0x60] sm:$0xff]
    %v928 = vld [vmem:[%s7 + $0x68] sm:$0xff]
    %v929 = vld [vmem:[%s7 + $0x70] sm:$0xff]
    %v930 = vld [vmem:[%s7 + $0x78] sm:$0xff]
    %v931 = vld [vmem:[%s7 + $0x80] sm:$0xff]
    %v932 = vld [vmem:[%s7 + $0x88] sm:$0xff]
    %v933 = vld [vmem:[%s7 + $0x90] sm:$0xff]
    %v934 = vld [vmem:[%s7 + $0x98] sm:$0xff]
    %v935 = vld [vmem:[%s7 + $0xa0] sm:$0xff]
    %v936 = vld [vmem:[%s7 + $0xa8] sm:$0xff]
    %v937 = vld [vmem:[%s7 + $0xb0] sm:$0xff]
    %v938 = vld [vmem:[%s7 + $0xb8] sm:$0xff]
    %v939 = vld [vmem:[%s7 + $0xc0] sm:$0xff]
    %v940 = vld [vmem:[%s7 + $0xc8] sm:$0xff]
    %v941 = vld [vmem:[%s7 + $0xd0] sm:$0xff]
    %v942 = vld [vmem:[%s7 + $0xd8] sm:$0xff]
    %v943 = vld [vmem:[%s7 + $0xe0] sm:$0xff]
    %v944 = vld [vmem:[%s7 + $0xe8] sm:$0xff]
    %v945 = vld [vmem:[%s7 + $0xf0] sm:$0xff]
    %v946 = vld [vmem:[%s7 + $0xf8] sm:$0xff]
    %s947 = scalar_lea.vmem %s7, 256
    %v948 = vld [vmem:[%s947] sm:$0xff]
    %v949 = vld [vmem:[%s947 + $0x8] sm:$0xff]
    %v950 = vld [vmem:[%s947 + $0x10] sm:$0xff]
    %v951 = vld [vmem:[%s947 + $0x18] sm:$0xff]
    %v952 = vld [vmem:[%s947 + $0x20] sm:$0xff]
    %v953 = vld [vmem:[%s947 + $0x28] sm:$0xff]
    %v954 = vld [vmem:[%s947 + $0x30] sm:$0xff]
    %v955 = vld [vmem:[%s947 + $0x38] sm:$0xff]
    %v956 = vld [vmem:[%s947 + $0x40] sm:$0xff]
    %v957 = vld [vmem:[%s947 + $0x48] sm:$0xff]
    %v958 = vld [vmem:[%s947 + $0x50] sm:$0xff]
    %v959 = vld [vmem:[%s947 + $0x58] sm:$0xff]
    %v960 = vld [vmem:[%s947 + $0x60] sm:$0xff]
    %v961 = vld [vmem:[%s947 + $0x68] sm:$0xff]
    %v962 = vld [vmem:[%s947 + $0x70] sm:$0xff]
    %v963 = vld [vmem:[%s947 + $0x78] sm:$0xff]
    %v964 = vld [vmem:[%s947 + $0x80] sm:$0xff]
    %v965 = vld [vmem:[%s947 + $0x88] sm:$0xff]
    %v966 = vld [vmem:[%s947 + $0x90] sm:$0xff]
    %v967 = vld [vmem:[%s947 + $0x98] sm:$0xff]
    %v968 = vld [vmem:[%s947 + $0xa0] sm:$0xff]
    %v969 = vld [vmem:[%s947 + $0xa8] sm:$0xff]
    %v970 = vld [vmem:[%s947 + $0xb0] sm:$0xff]
    %v971 = vld [vmem:[%s947 + $0xb8] sm:$0xff]
    %v972 = vld [vmem:[%s947 + $0xc0] sm:$0xff]
    %v973 = vld [vmem:[%s947 + $0xc8] sm:$0xff]
    %v974 = vld [vmem:[%s947 + $0xd0] sm:$0xff]
    %v975 = vld [vmem:[%s947 + $0xd8] sm:$0xff]
    %v976 = vld [vmem:[%s947 + $0xe0] sm:$0xff]
    %v977 = vld [vmem:[%s947 + $0xe8] sm:$0xff]
    %v978 = vld [vmem:[%s947 + $0xf0] sm:$0xff]
    %v979 = vld [vmem:[%s947 + $0xf8] sm:$0xff]
    %v982 = vrot.slane %v913, 1
    %v983 = vrot.slane %v914, 1
    %986 = vmatprep.subr.mxu0 0.0
    %987 = vmatpush1.msra.mxu0 %v963
    %988 = vmatprep.subr.mxu0 0.0
    %989 = vmatpush1.msra.mxu0 %v962
    %990 = vmatprep.subr.mxu0 0.0
    %991 = vmatpush1.msra.mxu0 %v961
    %992 = vmatprep.subr.mxu0 0.0
    %993 = vmatpush1.msra.mxu0 %v960
    %994 = vmatprep.subr.mxu0 0.0
    %995 = vmatpush1.msra.mxu0 %v959
    %996 = vmatprep.subr.mxu0 0.0
    %997 = vmatpush1.msra.mxu0 %v958
    %998 = vmatprep.subr.mxu0 0.0
    %999 = vmatpush1.msra.mxu0 %v957
    %1000 = vmatprep.subr.mxu0 0.0
    %1001 = vmatpush1.msra.mxu0 %v956
    %1002 = vmatprep.subr.mxu0 0.0
    %1003 = vmatpush1.msra.mxu0 %v955
    %1004 = vmatprep.subr.mxu0 0.0
    %1005 = vmatpush1.msra.mxu0 %v954
    %1006 = vmatprep.subr.mxu0 0.0
    %1007 = vmatpush1.msra.mxu0 %v953
    %1008 = vmatprep.subr.mxu0 0.0
    %1009 = vmatpush1.msra.mxu0 %v952
    %1010 = vmatprep.subr.mxu0 0.0
    %1011 = vmatpush1.msra.mxu0 %v951
    %1012 = vmatprep.subr.mxu0 0.0
    %1013 = vmatpush1.msra.mxu0 %v950
    %1014 = vmatprep.subr.mxu0 0.0
    %1015 = vmatpush1.msra.mxu0 %v949
    %1016 = vmatprep.subr.mxu0 0.0
    %1017 = vmatpush1.msra.mxu0 %v948
    %1018 = vmatprep.subr.mxu0 0.0
    %1019 = vmatpush2.msra.mxu0 %v979
    %1020 = vmatprep.subr.mxu0 0.0
    %1021 = vmatpush2.msra.mxu0 %v978
    %1022 = vmatprep.subr.mxu0 0.0
    %1023 = vmatpush2.msra.mxu0 %v977
    %1024 = vmatprep.subr.mxu0 0.0
    %1025 = vmatpush2.msra.mxu0 %v976
    %1026 = vmatprep.subr.mxu0 0.0
    %1027 = vmatpush2.msra.mxu0 %v975
    %1028 = vmatprep.subr.mxu0 0.0
    %1029 = vmatpush2.msra.mxu0 %v974
    %1030 = vmatprep.subr.mxu0 0.0
    %1031 = vmatpush2.msra.mxu0 %v973
    %1032 = vmatprep.subr.mxu0 0.0
    %1033 = vmatpush2.msra.mxu0 %v972
    %1034 = vmatprep.subr.mxu0 0.0
    %1035 = vmatpush2.msra.mxu0 %v971
    %1036 = vmatprep.subr.mxu0 0.0
    %1037 = vmatpush2.msra.mxu0 %v970
    %1038 = vmatprep.subr.mxu0 0.0
    %1039 = vmatpush2.msra.mxu0 %v969
    %1040 = vmatprep.subr.mxu0 0.0
    %1041 = vmatpush2.msra.mxu0 %v968
    %1042 = vmatprep.subr.mxu0 0.0
    %1043 = vmatpush2.msra.mxu0 %v967
    %1044 = vmatprep.subr.mxu0 0.0
    %1045 = vmatpush2.msra.mxu0 %v966
    %1046 = vmatprep.subr.mxu0 0.0
    %1047 = vmatpush2.msra.mxu0 %v965
    %1048 = vmatprep.subr.mxu0 0.0
    %1049 = vmatpush2.msra.mxu0 %v964
    %1050 = vmatprep.mubr.f32.mxu0 %v983
    %1051 = vmatmul.mubr.f32.gmra.mxu0 %v982
    %v1052 = vpop.f32.mrf.mxu0
    %v1053 = vadd.f32 0.0, %v1052
    %v1054 = vpop.f32.mrf.mxu0
    %1055 = vdwg.mxu0
    %1056 = vmatprep.subr.mxu0 0.0
    %1057 = vmatpush1.msra.mxu0 %v930
    %1058 = vmatprep.subr.mxu0 0.0
    %1059 = vmatpush1.msra.mxu0 %v929
    %1060 = vmatprep.subr.mxu0 0.0
    %1061 = vmatpush1.msra.mxu0 %v928
    %1062 = vmatprep.subr.mxu0 0.0
    %1063 = vmatpush1.msra.mxu0 %v927
    %1064 = vmatprep.subr.mxu0 0.0
    %1065 = vmatpush1.msra.mxu0 %v926
    %1066 = vmatprep.subr.mxu0 0.0
    %1067 = vmatpush1.msra.mxu0 %v925
    %1068 = vmatprep.subr.mxu0 0.0
    %1069 = vmatpush1.msra.mxu0 %v924
    %1070 = vmatprep.subr.mxu0 0.0
    %1071 = vmatpush1.msra.mxu0 %v923
    %1072 = vmatprep.subr.mxu0 0.0
    %1073 = vmatpush1.msra.mxu0 %v922
    %1074 = vmatprep.subr.mxu0 0.0
    %1075 = vmatpush1.msra.mxu0 %v921
    %1076 = vmatprep.subr.mxu0 0.0
    %1077 = vmatpush1.msra.mxu0 %v920
    %1078 = vmatprep.subr.mxu0 0.0
    %1079 = vmatpush1.msra.mxu0 %v919
    %1080 = vmatprep.subr.mxu0 0.0
    %1081 = vmatpush1.msra.mxu0 %v918
    %1082 = vmatprep.subr.mxu0 0.0
    %1083 = vmatpush1.msra.mxu0 %v917
    %1084 = vmatprep.subr.mxu0 0.0
    %1085 = vmatpush1.msra.mxu0 %v916
    %1086 = vmatprep.subr.mxu0 0.0
    %1087 = vmatpush1.msra.mxu0 %v915
    %1088 = vmatprep.subr.mxu0 0.0
    %1089 = vmatpush2.msra.mxu0 %v946
    %1090 = vmatprep.subr.mxu0 0.0
    %1091 = vmatpush2.msra.mxu0 %v945
    %1092 = vmatprep.subr.mxu0 0.0
    %1093 = vmatpush2.msra.mxu0 %v944
    %1094 = vmatprep.subr.mxu0 0.0
    %1095 = vmatpush2.msra.mxu0 %v943
    %1096 = vmatprep.subr.mxu0 0.0
    %1097 = vmatpush2.msra.mxu0 %v942
    %1098 = vmatprep.subr.mxu0 0.0
    %1099 = vmatpush2.msra.mxu0 %v941
    %1100 = vmatprep.subr.mxu0 0.0
    %1101 = vmatpush2.msra.mxu0 %v940
    %1102 = vmatprep.subr.mxu0 0.0
    %1103 = vmatpush2.msra.mxu0 %v939
    %1104 = vmatprep.subr.mxu0 0.0
    %1105 = vmatpush2.msra.mxu0 %v938
    %1106 = vmatprep.subr.mxu0 0.0
    %1107 = vmatpush2.msra.mxu0 %v937
    %1108 = vmatprep.subr.mxu0 0.0
    %1109 = vmatpush2.msra.mxu0 %v936
    %1110 = vmatprep.subr.mxu0 0.0
    %1111 = vmatpush2.msra.mxu0 %v935
    %1112 = vmatprep.subr.mxu0 0.0
    %1113 = vmatpush2.msra.mxu0 %v934
    %1114 = vmatprep.subr.mxu0 0.0
    %1115 = vmatpush2.msra.mxu0 %v933
    %1116 = vmatprep.subr.mxu0 0.0
    %1117 = vmatpush2.msra.mxu0 %v932
    %1118 = vmatprep.subr.mxu0 0.0
    %1119 = vmatpush2.msra.mxu0 %v931
    %1120 = vmatprep.mubr.f32.mxu0 %v914
    %1121 = vmatmul.mubr.f32.gmra.mxu0 %v913
    %v1122 = vpop.f32.mrf.mxu0
    %v1123 = vadd.f32 %v1053, %v1122
    %v1124 = vpop.f32.mrf.mxu0
    %1125 = vdwg.mxu0
    %v1126 = vld [vmem:[%s8] sm:$0x1]
    %v1127 = vadd.f32 %v1123, %v1126
    %vm1128 = vcmp.gt.f32.partialorder %v1127, 0.0
    %v1129 = vmul.f32 %v1127, 0.2
    %v1130 = vsel %vm1128, %v1127, %v1129
    %v1131 = vld [vmem:[%s9] sm:$0x1]
    %v1132 = vmul.f32 %v1130, %v1131
    %vm1133 = vcmask 253952
    %v1134 = vsel %vm1133, %v1132, 0.0
    %1135 = vadd.xlane.f32.xlu0 %v1134
    %v1136 = vpop.xlane.xlu0 %1135
    %s1137 = sld [smem:[#allocation5]]
    %v1138 = vstv %s1137
    %v1139 = vadd.f32 %v1136, %v1138
    %v1140 = vxor.u32 %v1139, 2147483648
    %v1141 = vmul.f32 %v1140, 1.442695
    %v1142 = vpow.pop %v1141
    %v1143 = vadd.f32 %v1142, 1.0
    %v1144 = vrcp.pop %v1143
    %v1145 = vmul.f32 1.0, %v1144
    %vm1146 = vcmask 0
    %1147 = vst.msk [vmem:[%s11] sm:$0x1] %vm1146, %v1145
    %s1148 = scalar_lea.vmem %s0, 8
    %v1149 = vld [vmem:[%s1148] sm:$0xff]
    %1150 = vst.msk [vmem:[#allocation2 + $0x1] sm:$0xff] %vm53, %v1149
    %v1151 = vld [vmem:[#allocation2] sm:$0xff]
    %v1152 = vld [vmem:[%s1] sm:$0xf]
    %v1153 = vld [vmem:[#allocation2 + $0x1] sm:$0xff]
    %v1154 = vld [vmem:[%s67] sm:$0xf]
    %v1156 = vsel %vm53, %v1153, 0
    %v1159 = vsel %vm72, %v1154, 0
    %1161 = vmatprep.subr.mxu0 0.0
    %1162 = vmatpush1.msra.mxu0 0.0
    %1163 = vmatprep.subr.mxu0 0.0
    %1164 = vmatpush1.msra.mxu0 0.0
    %1165 = vmatprep.subr.mxu0 0.0
    %1166 = vmatpush1.msra.mxu0 0.0
    %1167 = vmatprep.subr.mxu0 0.0
    %1168 = vmatpush1.msra.mxu0 0.0
    %1169 = vmatprep.subr.mxu0 0.0
    %1170 = vmatpush1.msra.mxu0 0.0
    %1171 = vmatprep.subr.mxu0 0.0
    %1172 = vmatpush1.msra.mxu0 0.0
    %1173 = vmatprep.subr.mxu0 0.0
    %1174 = vmatpush1.msra.mxu0 0.0
    %1175 = vmatprep.subr.mxu0 0.0
    %1176 = vmatpush1.msra.mxu0 0.0
    %1177 = vmatprep.subr.mxu0 0.0
    %1178 = vmatpush1.msra.mxu0 0.0
    %1179 = vmatprep.subr.mxu0 0.0
    %1180 = vmatpush1.msra.mxu0 0.0
    %1181 = vmatprep.subr.mxu0 0.0
    %1182 = vmatpush1.msra.mxu0 0.0
    %1183 = vmatprep.subr.mxu0 0.0
    %1184 = vmatpush1.msra.mxu0 0.0
    %1185 = vmatprep.subr.mxu0 0.0
    %1186 = vmatpush1.msra.mxu0 0.0
    %1187 = vmatprep.subr.mxu0 0.0
    %1188 = vmatpush1.msra.mxu0 0.0
    %1189 = vmatprep.subr.mxu0 0.0
    %1190 = vmatpush1.msra.mxu0 0.0
    %1191 = vmatprep.subr.mxu0 0.0
    %1192 = vmatpush1.msra.mxu0 %v1159
    %1193 = vmatprep.subr.mxu0 0.0
    %1194 = vmatpush2.msra.mxu0 0.0
    %1195 = vmatprep.subr.mxu0 0.0
    %1196 = vmatpush2.msra.mxu0 0.0
    %1197 = vmatprep.subr.mxu0 0.0
    %1198 = vmatpush2.msra.mxu0 0.0
    %1199 = vmatprep.subr.mxu0 0.0
    %1200 = vmatpush2.msra.mxu0 0.0
    %1201 = vmatprep.subr.mxu0 0.0
    %1202 = vmatpush2.msra.mxu0 0.0
    %1203 = vmatprep.subr.mxu0 0.0
    %1204 = vmatpush2.msra.mxu0 0.0
    %1205 = vmatprep.subr.mxu0 0.0
    %1206 = vmatpush2.msra.mxu0 0.0
    %1207 = vmatprep.subr.mxu0 0.0
    %1208 = vmatpush2.msra.mxu0 0.0
    %1209 = vmatprep.subr.mxu0 0.0
    %1210 = vmatpush2.msra.mxu0 0.0
    %1211 = vmatprep.subr.mxu0 0.0
    %1212 = vmatpush2.msra.mxu0 0.0
    %1213 = vmatprep.subr.mxu0 0.0
    %1214 = vmatpush2.msra.mxu0 0.0
    %1215 = vmatprep.subr.mxu0 0.0
    %1216 = vmatpush2.msra.mxu0 0.0
    %1217 = vmatprep.subr.mxu0 0.0
    %1218 = vmatpush2.msra.mxu0 0.0
    %1219 = vmatprep.subr.mxu0 0.0
    %1220 = vmatpush2.msra.mxu0 0.0
    %1221 = vmatprep.subr.mxu0 0.0
    %1222 = vmatpush2.msra.mxu0 0.0
    %1223 = vmatprep.subr.mxu0 0.0
    %1224 = vmatpush2.msra.mxu0 0.0
    %1225 = vmatprep.mubr.f32.mxu0 0.0
    %1226 = vmatmul.mubr.f32.gmra.mxu0 %v1156
    %v1227 = vpop.f32.mrf.mxu0
    %v1228 = vadd.f32 0.0, %v1227
    %v1229 = vpop.f32.mrf.mxu0
    %1230 = vdwg.mxu0
    %v1232 = vsel %vm53, %v1151, 0
    %v1235 = vsel %vm72, %v1152, 0
    %1237 = vmatprep.subr.mxu0 0.0
    %1238 = vmatpush1.msra.mxu0 0.0
    %1239 = vmatprep.subr.mxu0 0.0
    %1240 = vmatpush1.msra.mxu0 0.0
    %1241 = vmatprep.subr.mxu0 0.0
    %1242 = vmatpush1.msra.mxu0 0.0
    %1243 = vmatprep.subr.mxu0 0.0
    %1244 = vmatpush1.msra.mxu0 0.0
    %1245 = vmatprep.subr.mxu0 0.0
    %1246 = vmatpush1.msra.mxu0 0.0
    %1247 = vmatprep.subr.mxu0 0.0
    %1248 = vmatpush1.msra.mxu0 0.0
    %1249 = vmatprep.subr.mxu0 0.0
    %1250 = vmatpush1.msra.mxu0 0.0
    %1251 = vmatprep.subr.mxu0 0.0
    %1252 = vmatpush1.msra.mxu0 0.0
    %1253 = vmatprep.subr.mxu0 0.0
    %1254 = vmatpush1.msra.mxu0 0.0
    %1255 = vmatprep.subr.mxu0 0.0
    %1256 = vmatpush1.msra.mxu0 0.0
    %1257 = vmatprep.subr.mxu0 0.0
    %1258 = vmatpush1.msra.mxu0 0.0
    %1259 = vmatprep.subr.mxu0 0.0
    %1260 = vmatpush1.msra.mxu0 0.0
    %1261 = vmatprep.subr.mxu0 0.0
    %1262 = vmatpush1.msra.mxu0 0.0
    %1263 = vmatprep.subr.mxu0 0.0
    %1264 = vmatpush1.msra.mxu0 0.0
    %1265 = vmatprep.subr.mxu0 0.0
    %1266 = vmatpush1.msra.mxu0 0.0
    %1267 = vmatprep.subr.mxu0 0.0
    %1268 = vmatpush1.msra.mxu0 %v1235
    %1269 = vmatprep.subr.mxu0 0.0
    %1270 = vmatpush2.msra.mxu0 0.0
    %1271 = vmatprep.subr.mxu0 0.0
    %1272 = vmatpush2.msra.mxu0 0.0
    %1273 = vmatprep.subr.mxu0 0.0
    %1274 = vmatpush2.msra.mxu0 0.0
    %1275 = vmatprep.subr.mxu0 0.0
    %1276 = vmatpush2.msra.mxu0 0.0
    %1277 = vmatprep.subr.mxu0 0.0
    %1278 = vmatpush2.msra.mxu0 0.0
    %1279 = vmatprep.subr.mxu0 0.0
    %1280 = vmatpush2.msra.mxu0 0.0
    %1281 = vmatprep.subr.mxu0 0.0
    %1282 = vmatpush2.msra.mxu0 0.0
    %1283 = vmatprep.subr.mxu0 0.0
    %1284 = vmatpush2.msra.mxu0 0.0
    %1285 = vmatprep.subr.mxu0 0.0
    %1286 = vmatpush2.msra.mxu0 0.0
    %1287 = vmatprep.subr.mxu0 0.0
    %1288 = vmatpush2.msra.mxu0 0.0
    %1289 = vmatprep.subr.mxu0 0.0
    %1290 = vmatpush2.msra.mxu0 0.0
    %1291 = vmatprep.subr.mxu0 0.0
    %1292 = vmatpush2.msra.mxu0 0.0
    %1293 = vmatprep.subr.mxu0 0.0
    %1294 = vmatpush2.msra.mxu0 0.0
    %1295 = vmatprep.subr.mxu0 0.0
    %1296 = vmatpush2.msra.mxu0 0.0
    %1297 = vmatprep.subr.mxu0 0.0
    %1298 = vmatpush2.msra.mxu0 0.0
    %1299 = vmatprep.subr.mxu0 0.0
    %1300 = vmatpush2.msra.mxu0 0.0
    %1301 = vmatprep.mubr.f32.mxu0 0.0
    %1302 = vmatmul.mubr.f32.gmra.mxu0 %v1232
    %v1303 = vpop.f32.mrf.mxu0
    %v1304 = vadd.f32 %v1228, %v1303
    %v1305 = vpop.f32.mrf.mxu0
    %1306 = vdwg.mxu0
    %v1307 = vld [vmem:[#allocation2 + $0x2] sm:$0xff]
    %v1308 = vld [vmem:[%s223] sm:$0xf]
    %v1310 = vsel %vm53, %v1307, 0
    %v1313 = vsel %vm72, %v1308, 0
    %1315 = vmatprep.subr.mxu0 0.0
    %1316 = vmatpush1.msra.mxu0 0.0
    %1317 = vmatprep.subr.mxu0 0.0
    %1318 = vmatpush1.msra.mxu0 0.0
    %1319 = vmatprep.subr.mxu0 0.0
    %1320 = vmatpush1.msra.mxu0 0.0
    %1321 = vmatprep.subr.mxu0 0.0
    %1322 = vmatpush1.msra.mxu0 0.0
    %1323 = vmatprep.subr.mxu0 0.0
    %1324 = vmatpush1.msra.mxu0 0.0
    %1325 = vmatprep.subr.mxu0 0.0
    %1326 = vmatpush1.msra.mxu0 0.0
    %1327 = vmatprep.subr.mxu0 0.0
    %1328 = vmatpush1.msra.mxu0 0.0
    %1329 = vmatprep.subr.mxu0 0.0
    %1330 = vmatpush1.msra.mxu0 0.0
    %1331 = vmatprep.subr.mxu0 0.0
    %1332 = vmatpush1.msra.mxu0 0.0
    %1333 = vmatprep.subr.mxu0 0.0
    %1334 = vmatpush1.msra.mxu0 0.0
    %1335 = vmatprep.subr.mxu0 0.0
    %1336 = vmatpush1.msra.mxu0 0.0
    %1337 = vmatprep.subr.mxu0 0.0
    %1338 = vmatpush1.msra.mxu0 0.0
    %1339 = vmatprep.subr.mxu0 0.0
    %1340 = vmatpush1.msra.mxu0 0.0
    %1341 = vmatprep.subr.mxu0 0.0
    %1342 = vmatpush1.msra.mxu0 0.0
    %1343 = vmatprep.subr.mxu0 0.0
    %1344 = vmatpush1.msra.mxu0 0.0
    %1345 = vmatprep.subr.mxu0 0.0
    %1346 = vmatpush1.msra.mxu0 %v1313
    %1347 = vmatprep.subr.mxu0 0.0
    %1348 = vmatpush2.msra.mxu0 0.0
    %1349 = vmatprep.subr.mxu0 0.0
    %1350 = vmatpush2.msra.mxu0 0.0
    %1351 = vmatprep.subr.mxu0 0.0
    %1352 = vmatpush2.msra.mxu0 0.0
    %1353 = vmatprep.subr.mxu0 0.0
    %1354 = vmatpush2.msra.mxu0 0.0
    %1355 = vmatprep.subr.mxu0 0.0
    %1356 = vmatpush2.msra.mxu0 0.0
    %1357 = vmatprep.subr.mxu0 0.0
    %1358 = vmatpush2.msra.mxu0 0.0
    %1359 = vmatprep.subr.mxu0 0.0
    %1360 = vmatpush2.msra.mxu0 0.0
    %1361 = vmatprep.subr.mxu0 0.0
    %1362 = vmatpush2.msra.mxu0 0.0
    %1363 = vmatprep.subr.mxu0 0.0
    %1364 = vmatpush2.msra.mxu0 0.0
    %1365 = vmatprep.subr.mxu0 0.0
    %1366 = vmatpush2.msra.mxu0 0.0
    %1367 = vmatprep.subr.mxu0 0.0
    %1368 = vmatpush2.msra.mxu0 0.0
    %1369 = vmatprep.subr.mxu0 0.0
    %1370 = vmatpush2.msra.mxu0 0.0
    %1371 = vmatprep.subr.mxu0 0.0
    %1372 = vmatpush2.msra.mxu0 0.0
    %1373 = vmatprep.subr.mxu0 0.0
    %1374 = vmatpush2.msra.mxu0 0.0
    %1375 = vmatprep.subr.mxu0 0.0
    %1376 = vmatpush2.msra.mxu0 0.0
    %1377 = vmatprep.subr.mxu0 0.0
    %1378 = vmatpush2.msra.mxu0 0.0
    %1379 = vmatprep.mubr.f32.mxu0 0.0
    %1380 = vmatmul.mubr.f32.gmra.mxu0 %v1310
    %v1381 = vpop.f32.mrf.mxu0
    %v1382 = vadd.f32 0.0, %v1381
    %v1383 = vpop.f32.mrf.mxu0
    %1384 = vdwg.mxu0
    %v1385 = vadd.f32 %v1304, %v1382
    %v1386 = vld [vmem:[%s2] sm:$0x1]
    %v1388 = vlaneseq
    %v1389 = vshrl.u32 %v1388, 7
    %v1390 = vsub.s32 0, %v1389
    %v1391 = vrot.slane %v1386, %v1390
    %v1393 = vadd.f32 %v1385, %v1391
    %vm1394 = vcmp.gt.f32.partialorder %v1393, 0.0
    %v1395 = vmul.f32 %v1393, 0.2
    %v1396 = vsel %vm1394, %v1393, %v1395
    %1397 = vst.msk [vmem:[#allocation3 + $0x1] sm:$0xff] %vm57, %v1396
    %v1398 = vld [vmem:[#allocation3] ss:$2 sm:$0xf]
    %v1399 = vld [vmem:[%s3] sm:$0xff]
    %v1400 = vld [vmem:[%s3 + $0x8] sm:$0xff]
    %v1401 = vld [vmem:[%s3 + $0x10] sm:$0xff]
    %v1402 = vld [vmem:[%s3 + $0x18] sm:$0xff]
    %v1403 = vld [vmem:[%s3 + $0x20] sm:$0xff]
    %v1404 = vld [vmem:[%s3 + $0x28] sm:$0xff]
    %v1405 = vld [vmem:[%s3 + $0x30] sm:$0xff]
    %v1406 = vld [vmem:[%s3 + $0x38] sm:$0xff]
    %v1407 = vld [vmem:[%s323] ss:$2 sm:$0xf]
    %v1408 = vld [vmem:[%s325] sm:$0xff]
    %v1409 = vld [vmem:[%s325 + $0x8] sm:$0xff]
    %v1410 = vld [vmem:[%s325 + $0x10] sm:$0xff]
    %v1411 = vld [vmem:[%s325 + $0x18] sm:$0xff]
    %v1412 = vld [vmem:[%s325 + $0x20] sm:$0xff]
    %v1413 = vld [vmem:[%s325 + $0x28] sm:$0xff]
    %v1414 = vld [vmem:[%s325 + $0x30] sm:$0xff]
    %v1415 = vld [vmem:[%s325 + $0x38] sm:$0xff]
    %v1417 = vsel %vm57, %v1407, 0
    %1419 = vmatprep.subr.mxu0 0.0
    %1420 = vmatpush1.msra.mxu0 0.0
    %1421 = vmatprep.subr.mxu0 0.0
    %1422 = vmatpush1.msra.mxu0 0.0
    %1423 = vmatprep.subr.mxu0 0.0
    %1424 = vmatpush1.msra.mxu0 0.0
    %1425 = vmatprep.subr.mxu0 0.0
    %1426 = vmatpush1.msra.mxu0 0.0
    %1427 = vmatprep.subr.mxu0 0.0
    %1428 = vmatpush1.msra.mxu0 0.0
    %1429 = vmatprep.subr.mxu0 0.0
    %1430 = vmatpush1.msra.mxu0 0.0
    %1431 = vmatprep.subr.mxu0 0.0
    %1432 = vmatpush1.msra.mxu0 0.0
    %1433 = vmatprep.subr.mxu0 0.0
    %1434 = vmatpush1.msra.mxu0 0.0
    %1435 = vmatprep.subr.mxu0 0.0
    %1436 = vmatpush1.msra.mxu0 %v1415
    %1437 = vmatprep.subr.mxu0 0.0
    %1438 = vmatpush1.msra.mxu0 %v1414
    %1439 = vmatprep.subr.mxu0 0.0
    %1440 = vmatpush1.msra.mxu0 %v1413
    %1441 = vmatprep.subr.mxu0 0.0
    %1442 = vmatpush1.msra.mxu0 %v1412
    %1443 = vmatprep.subr.mxu0 0.0
    %1444 = vmatpush1.msra.mxu0 %v1411
    %1445 = vmatprep.subr.mxu0 0.0
    %1446 = vmatpush1.msra.mxu0 %v1410
    %1447 = vmatprep.subr.mxu0 0.0
    %1448 = vmatpush1.msra.mxu0 %v1409
    %1449 = vmatprep.subr.mxu0 0.0
    %1450 = vmatpush1.msra.mxu0 %v1408
    %1451 = vmatprep.subr.mxu0 0.0
    %1452 = vmatpush2.msra.mxu0 0.0
    %1453 = vmatprep.subr.mxu0 0.0
    %1454 = vmatpush2.msra.mxu0 0.0
    %1455 = vmatprep.subr.mxu0 0.0
    %1456 = vmatpush2.msra.mxu0 0.0
    %1457 = vmatprep.subr.mxu0 0.0
    %1458 = vmatpush2.msra.mxu0 0.0
    %1459 = vmatprep.subr.mxu0 0.0
    %1460 = vmatpush2.msra.mxu0 0.0
    %1461 = vmatprep.subr.mxu0 0.0
    %1462 = vmatpush2.msra.mxu0 0.0
    %1463 = vmatprep.subr.mxu0 0.0
    %1464 = vmatpush2.msra.mxu0 0.0
    %1465 = vmatprep.subr.mxu0 0.0
    %1466 = vmatpush2.msra.mxu0 0.0
    %1467 = vmatprep.subr.mxu0 0.0
    %1468 = vmatpush2.msra.mxu0 0.0
    %1469 = vmatprep.subr.mxu0 0.0
    %1470 = vmatpush2.msra.mxu0 0.0
    %1471 = vmatprep.subr.mxu0 0.0
    %1472 = vmatpush2.msra.mxu0 0.0
    %1473 = vmatprep.subr.mxu0 0.0
    %1474 = vmatpush2.msra.mxu0 0.0
    %1475 = vmatprep.subr.mxu0 0.0
    %1476 = vmatpush2.msra.mxu0 0.0
    %1477 = vmatprep.subr.mxu0 0.0
    %1478 = vmatpush2.msra.mxu0 0.0
    %1479 = vmatprep.subr.mxu0 0.0
    %1480 = vmatpush2.msra.mxu0 0.0
    %1481 = vmatprep.subr.mxu0 0.0
    %1482 = vmatpush2.msra.mxu0 0.0
    %1483 = vmatprep.mubr.f32.mxu0 0.0
    %1484 = vmatmul.mubr.f32.gmra.mxu0 %v1417
    %v1485 = vpop.f32.mrf.mxu0
    %v1486 = vadd.f32 0.0, %v1485
    %v1487 = vpop.f32.mrf.mxu0
    %1488 = vdwg.mxu0
    %v1490 = vsel %vm57, %v1398, 0
    %1492 = vmatprep.subr.mxu0 0.0
    %1493 = vmatpush1.msra.mxu0 0.0
    %1494 = vmatprep.subr.mxu0 0.0
    %1495 = vmatpush1.msra.mxu0 0.0
    %1496 = vmatprep.subr.mxu0 0.0
    %1497 = vmatpush1.msra.mxu0 0.0
    %1498 = vmatprep.subr.mxu0 0.0
    %1499 = vmatpush1.msra.mxu0 0.0
    %1500 = vmatprep.subr.mxu0 0.0
    %1501 = vmatpush1.msra.mxu0 0.0
    %1502 = vmatprep.subr.mxu0 0.0
    %1503 = vmatpush1.msra.mxu0 0.0
    %1504 = vmatprep.subr.mxu0 0.0
    %1505 = vmatpush1.msra.mxu0 0.0
    %1506 = vmatprep.subr.mxu0 0.0
    %1507 = vmatpush1.msra.mxu0 0.0
    %1508 = vmatprep.subr.mxu0 0.0
    %1509 = vmatpush1.msra.mxu0 %v1406
    %1510 = vmatprep.subr.mxu0 0.0
    %1511 = vmatpush1.msra.mxu0 %v1405
    %1512 = vmatprep.subr.mxu0 0.0
    %1513 = vmatpush1.msra.mxu0 %v1404
    %1514 = vmatprep.subr.mxu0 0.0
    %1515 = vmatpush1.msra.mxu0 %v1403
    %1516 = vmatprep.subr.mxu0 0.0
    %1517 = vmatpush1.msra.mxu0 %v1402
    %1518 = vmatprep.subr.mxu0 0.0
    %1519 = vmatpush1.msra.mxu0 %v1401
    %1520 = vmatprep.subr.mxu0 0.0
    %1521 = vmatpush1.msra.mxu0 %v1400
    %1522 = vmatprep.subr.mxu0 0.0
    %1523 = vmatpush1.msra.mxu0 %v1399
    %1524 = vmatprep.subr.mxu0 0.0
    %1525 = vmatpush2.msra.mxu0 0.0
    %1526 = vmatprep.subr.mxu0 0.0
    %1527 = vmatpush2.msra.mxu0 0.0
    %1528 = vmatprep.subr.mxu0 0.0
    %1529 = vmatpush2.msra.mxu0 0.0
    %1530 = vmatprep.subr.mxu0 0.0
    %1531 = vmatpush2.msra.mxu0 0.0
    %1532 = vmatprep.subr.mxu0 0.0
    %1533 = vmatpush2.msra.mxu0 0.0
    %1534 = vmatprep.subr.mxu0 0.0
    %1535 = vmatpush2.msra.mxu0 0.0
    %1536 = vmatprep.subr.mxu0 0.0
    %1537 = vmatpush2.msra.mxu0 0.0
    %1538 = vmatprep.subr.mxu0 0.0
    %1539 = vmatpush2.msra.mxu0 0.0
    %1540 = vmatprep.subr.mxu0 0.0
    %1541 = vmatpush2.msra.mxu0 0.0
    %1542 = vmatprep.subr.mxu0 0.0
    %1543 = vmatpush2.msra.mxu0 0.0
    %1544 = vmatprep.subr.mxu0 0.0
    %1545 = vmatpush2.msra.mxu0 0.0
    %1546 = vmatprep.subr.mxu0 0.0
    %1547 = vmatpush2.msra.mxu0 0.0
    %1548 = vmatprep.subr.mxu0 0.0
    %1549 = vmatpush2.msra.mxu0 0.0
    %1550 = vmatprep.subr.mxu0 0.0
    %1551 = vmatpush2.msra.mxu0 0.0
    %1552 = vmatprep.subr.mxu0 0.0
    %1553 = vmatpush2.msra.mxu0 0.0
    %1554 = vmatprep.subr.mxu0 0.0
    %1555 = vmatpush2.msra.mxu0 0.0
    %1556 = vmatprep.mubr.f32.mxu0 0.0
    %1557 = vmatmul.mubr.f32.gmra.mxu0 %v1490
    %v1558 = vpop.f32.mrf.mxu0
    %v1559 = vadd.f32 %v1486, %v1558
    %v1560 = vpop.f32.mrf.mxu0
    %1561 = vdwg.mxu0
    %v1562 = vld [vmem:[%s480] ss:$2 sm:$0xf]
    %v1563 = vld [vmem:[%s482] sm:$0xff]
    %v1564 = vld [vmem:[%s482 + $0x8] sm:$0xff]
    %v1565 = vld [vmem:[%s482 + $0x10] sm:$0xff]
    %v1566 = vld [vmem:[%s482 + $0x18] sm:$0xff]
    %v1567 = vld [vmem:[%s482 + $0x20] sm:$0xff]
    %v1568 = vld [vmem:[%s482 + $0x28] sm:$0xff]
    %v1569 = vld [vmem:[%s482 + $0x30] sm:$0xff]
    %v1570 = vld [vmem:[%s482 + $0x38] sm:$0xff]
    %v1572 = vsel %vm57, %v1562, 0
    %1574 = vmatprep.subr.mxu0 0.0
    %1575 = vmatpush1.msra.mxu0 0.0
    %1576 = vmatprep.subr.mxu0 0.0
    %1577 = vmatpush1.msra.mxu0 0.0
    %1578 = vmatprep.subr.mxu0 0.0
    %1579 = vmatpush1.msra.mxu0 0.0
    %1580 = vmatprep.subr.mxu0 0.0
    %1581 = vmatpush1.msra.mxu0 0.0
    %1582 = vmatprep.subr.mxu0 0.0
    %1583 = vmatpush1.msra.mxu0 0.0
    %1584 = vmatprep.subr.mxu0 0.0
    %1585 = vmatpush1.msra.mxu0 0.0
    %1586 = vmatprep.subr.mxu0 0.0
    %1587 = vmatpush1.msra.mxu0 0.0
    %1588 = vmatprep.subr.mxu0 0.0
    %1589 = vmatpush1.msra.mxu0 0.0
    %1590 = vmatprep.subr.mxu0 0.0
    %1591 = vmatpush1.msra.mxu0 %v1570
    %1592 = vmatprep.subr.mxu0 0.0
    %1593 = vmatpush1.msra.mxu0 %v1569
    %1594 = vmatprep.subr.mxu0 0.0
    %1595 = vmatpush1.msra.mxu0 %v1568
    %1596 = vmatprep.subr.mxu0 0.0
    %1597 = vmatpush1.msra.mxu0 %v1567
    %1598 = vmatprep.subr.mxu0 0.0
    %1599 = vmatpush1.msra.mxu0 %v1566
    %1600 = vmatprep.subr.mxu0 0.0
    %1601 = vmatpush1.msra.mxu0 %v1565
    %1602 = vmatprep.subr.mxu0 0.0
    %1603 = vmatpush1.msra.mxu0 %v1564
    %1604 = vmatprep.subr.mxu0 0.0
    %1605 = vmatpush1.msra.mxu0 %v1563
    %1606 = vmatprep.subr.mxu0 0.0
    %1607 = vmatpush2.msra.mxu0 0.0
    %1608 = vmatprep.subr.mxu0 0.0
    %1609 = vmatpush2.msra.mxu0 0.0
    %1610 = vmatprep.subr.mxu0 0.0
    %1611 = vmatpush2.msra.mxu0 0.0
    %1612 = vmatprep.subr.mxu0 0.0
    %1613 = vmatpush2.msra.mxu0 0.0
    %1614 = vmatprep.subr.mxu0 0.0
    %1615 = vmatpush2.msra.mxu0 0.0
    %1616 = vmatprep.subr.mxu0 0.0
    %1617 = vmatpush2.msra.mxu0 0.0
    %1618 = vmatprep.subr.mxu0 0.0
    %1619 = vmatpush2.msra.mxu0 0.0
    %1620 = vmatprep.subr.mxu0 0.0
    %1621 = vmatpush2.msra.mxu0 0.0
    %1622 = vmatprep.subr.mxu0 0.0
    %1623 = vmatpush2.msra.mxu0 0.0
    %1624 = vmatprep.subr.mxu0 0.0
    %1625 = vmatpush2.msra.mxu0 0.0
    %1626 = vmatprep.subr.mxu0 0.0
    %1627 = vmatpush2.msra.mxu0 0.0
    %1628 = vmatprep.subr.mxu0 0.0
    %1629 = vmatpush2.msra.mxu0 0.0
    %1630 = vmatprep.subr.mxu0 0.0
    %1631 = vmatpush2.msra.mxu0 0.0
    %1632 = vmatprep.subr.mxu0 0.0
    %1633 = vmatpush2.msra.mxu0 0.0
    %1634 = vmatprep.subr.mxu0 0.0
    %1635 = vmatpush2.msra.mxu0 0.0
    %1636 = vmatprep.subr.mxu0 0.0
    %1637 = vmatpush2.msra.mxu0 0.0
    %1638 = vmatprep.mubr.f32.mxu0 0.0
    %1639 = vmatmul.mubr.f32.gmra.mxu0 %v1572
    %v1640 = vpop.f32.mrf.mxu0
    %v1641 = vadd.f32 0.0, %v1640
    %v1642 = vpop.f32.mrf.mxu0
    %1643 = vdwg.mxu0
    %v1644 = vadd.f32 %v1559, %v1641
    %v1645 = vld [vmem:[%s4] sm:$0x1]
    %v1647 = vlaneseq
    %v1648 = vshrl.u32 %v1647, 7
    %v1649 = vsub.s32 0, %v1648
    %v1650 = vrot.slane %v1645, %v1649
    %v1652 = vadd.f32 %v1644, %v1650
    %vm1653 = vcmp.gt.f32.partialorder %v1652, 0.0
    %v1654 = vmul.f32 %v1652, 0.2
    %v1655 = vsel %vm1653, %v1652, %v1654
    %1656 = vst [vmem:[#allocation4 + $0x1] sm:$0xf] %v1655
    %v1657 = vld [vmem:[#allocation4] ss:$2 sm:$0x3]
    %v1658 = vld [vmem:[#allocation6] sm:$0xff]
    %v1659 = vld [vmem:[#allocation6 + $0x8] sm:$0xff]
    %v1660 = vld [vmem:[#allocation6 + $0x10] sm:$0xff]
    %v1661 = vld [vmem:[#allocation6 + $0x18] sm:$0xff]
    %v1662 = vld [vmem:[#allocation6 + $0x20] sm:$0xff]
    %v1663 = vld [vmem:[#allocation6 + $0x28] sm:$0xff]
    %v1664 = vld [vmem:[#allocation6 + $0x30] sm:$0xff]
    %v1665 = vld [vmem:[#allocation6 + $0x38] sm:$0xff]
    %v1666 = vld [vmem:[#allocation6 + $0x40] sm:$0xff]
    %v1667 = vld [vmem:[#allocation6 + $0x48] sm:$0xff]
    %v1668 = vld [vmem:[#allocation6 + $0x50] sm:$0xff]
    %v1669 = vld [vmem:[#allocation6 + $0x58] sm:$0xff]
    %v1670 = vld [vmem:[#allocation6 + $0x60] sm:$0xff]
    %v1671 = vld [vmem:[#allocation6 + $0x68] sm:$0xff]
    %v1672 = vld [vmem:[#allocation6 + $0x70] sm:$0xff]
    %v1673 = vld [vmem:[#allocation6 + $0x78] sm:$0xff]
    %v1674 = vld [vmem:[#allocation6 + $0x80] sm:$0xff]
    %v1675 = vld [vmem:[#allocation6 + $0x88] sm:$0xff]
    %v1676 = vld [vmem:[#allocation6 + $0x90] sm:$0xff]
    %v1677 = vld [vmem:[#allocation6 + $0x98] sm:$0xff]
    %v1678 = vld [vmem:[#allocation6 + $0xa0] sm:$0xff]
    %v1679 = vld [vmem:[#allocation6 + $0xa8] sm:$0xff]
    %v1680 = vld [vmem:[#allocation6 + $0xb0] sm:$0xff]
    %v1681 = vld [vmem:[#allocation6 + $0xb8] sm:$0xff]
    %v1682 = vld [vmem:[#allocation6 + $0xc0] sm:$0xff]
    %v1683 = vld [vmem:[#allocation6 + $0xc8] sm:$0xff]
    %v1684 = vld [vmem:[#allocation6 + $0xd0] sm:$0xff]
    %v1685 = vld [vmem:[#allocation6 + $0xd8] sm:$0xff]
    %v1686 = vld [vmem:[#allocation6 + $0xe0] sm:$0xff]
    %v1687 = vld [vmem:[#allocation6 + $0xe8] sm:$0xff]
    %v1688 = vld [vmem:[#allocation6 + $0xf0] sm:$0xff]
    %v1689 = vld [vmem:[#allocation6 + $0xf8] sm:$0xff]
    %v1690 = vld [vmem:[%s610] ss:$2 sm:$0x3]
    %v1691 = vld [vmem:[%s612] sm:$0xff]
    %v1692 = vld [vmem:[%s612 + $0x8] sm:$0xff]
    %v1693 = vld [vmem:[%s612 + $0x10] sm:$0xff]
    %v1694 = vld [vmem:[%s612 + $0x18] sm:$0xff]
    %v1695 = vld [vmem:[%s612 + $0x20] sm:$0xff]
    %v1696 = vld [vmem:[%s612 + $0x28] sm:$0xff]
    %v1697 = vld [vmem:[%s612 + $0x30] sm:$0xff]
    %v1698 = vld [vmem:[%s612 + $0x38] sm:$0xff]
    %v1699 = vld [vmem:[%s612 + $0x40] sm:$0xff]
    %v1700 = vld [vmem:[%s612 + $0x48] sm:$0xff]
    %v1701 = vld [vmem:[%s612 + $0x50] sm:$0xff]
    %v1702 = vld [vmem:[%s612 + $0x58] sm:$0xff]
    %v1703 = vld [vmem:[%s612 + $0x60] sm:$0xff]
    %v1704 = vld [vmem:[%s612 + $0x68] sm:$0xff]
    %v1705 = vld [vmem:[%s612 + $0x70] sm:$0xff]
    %v1706 = vld [vmem:[%s612 + $0x78] sm:$0xff]
    %v1707 = vld [vmem:[%s612 + $0x80] sm:$0xff]
    %v1708 = vld [vmem:[%s612 + $0x88] sm:$0xff]
    %v1709 = vld [vmem:[%s612 + $0x90] sm:$0xff]
    %v1710 = vld [vmem:[%s612 + $0x98] sm:$0xff]
    %v1711 = vld [vmem:[%s612 + $0xa0] sm:$0xff]
    %v1712 = vld [vmem:[%s612 + $0xa8] sm:$0xff]
    %v1713 = vld [vmem:[%s612 + $0xb0] sm:$0xff]
    %v1714 = vld [vmem:[%s612 + $0xb8] sm:$0xff]
    %v1715 = vld [vmem:[%s612 + $0xc0] sm:$0xff]
    %v1716 = vld [vmem:[%s612 + $0xc8] sm:$0xff]
    %v1717 = vld [vmem:[%s612 + $0xd0] sm:$0xff]
    %v1718 = vld [vmem:[%s612 + $0xd8] sm:$0xff]
    %v1719 = vld [vmem:[%s612 + $0xe0] sm:$0xff]
    %v1720 = vld [vmem:[%s612 + $0xe8] sm:$0xff]
    %v1721 = vld [vmem:[%s612 + $0xf0] sm:$0xff]
    %v1722 = vld [vmem:[%s612 + $0xf8] sm:$0xff]
    %1723 = vmatprep.subr.mxu0 %v1722
    %1724 = vmatpush1.msra.mxu0 %v1721
    %1725 = vmatprep.subr.mxu0 %v1720
    %1726 = vmatpush1.msra.mxu0 %v1719
    %1727 = vmatprep.subr.mxu0 %v1718
    %1728 = vmatpush1.msra.mxu0 %v1717
    %1729 = vmatprep.subr.mxu0 %v1716
    %1730 = vmatpush1.msra.mxu0 %v1715
    %1731 = vmatprep.subr.mxu0 %v1714
    %1732 = vmatpush1.msra.mxu0 %v1713
    %1733 = vmatprep.subr.mxu0 %v1712
    %1734 = vmatpush1.msra.mxu0 %v1711
    %1735 = vmatprep.subr.mxu0 %v1710
    %1736 = vmatpush1.msra.mxu0 %v1709
    %1737 = vmatprep.subr.mxu0 %v1708
    %1738 = vmatpush1.msra.mxu0 %v1707
    %1739 = vmatprep.subr.mxu0 %v1706
    %1740 = vmatpush1.msra.mxu0 %v1705
    %1741 = vmatprep.subr.mxu0 %v1704
    %1742 = vmatpush1.msra.mxu0 %v1703
    %1743 = vmatprep.subr.mxu0 %v1702
    %1744 = vmatpush1.msra.mxu0 %v1701
    %1745 = vmatprep.subr.mxu0 %v1700
    %1746 = vmatpush1.msra.mxu0 %v1699
    %1747 = vmatprep.subr.mxu0 %v1698
    %1748 = vmatpush1.msra.mxu0 %v1697
    %1749 = vmatprep.subr.mxu0 %v1696
    %1750 = vmatpush1.msra.mxu0 %v1695
    %1751 = vmatprep.subr.mxu0 %v1694
    %1752 = vmatpush1.msra.mxu0 %v1693
    %1753 = vmatprep.subr.mxu0 %v1692
    %1754 = vmatpush1.msra.mxu0 %v1691
    %1755 = vmatprep.subr.mxu0 0.0
    %1756 = vmatpush2.msra.mxu0 0.0
    %1757 = vmatprep.subr.mxu0 0.0
    %1758 = vmatpush2.msra.mxu0 0.0
    %1759 = vmatprep.subr.mxu0 0.0
    %1760 = vmatpush2.msra.mxu0 0.0
    %1761 = vmatprep.subr.mxu0 0.0
    %1762 = vmatpush2.msra.mxu0 0.0
    %1763 = vmatprep.subr.mxu0 0.0
    %1764 = vmatpush2.msra.mxu0 0.0
    %1765 = vmatprep.subr.mxu0 0.0
    %1766 = vmatpush2.msra.mxu0 0.0
    %1767 = vmatprep.subr.mxu0 0.0
    %1768 = vmatpush2.msra.mxu0 0.0
    %1769 = vmatprep.subr.mxu0 0.0
    %1770 = vmatpush2.msra.mxu0 0.0
    %1771 = vmatprep.subr.mxu0 0.0
    %1772 = vmatpush2.msra.mxu0 0.0
    %1773 = vmatprep.subr.mxu0 0.0
    %1774 = vmatpush2.msra.mxu0 0.0
    %1775 = vmatprep.subr.mxu0 0.0
    %1776 = vmatpush2.msra.mxu0 0.0
    %1777 = vmatprep.subr.mxu0 0.0
    %1778 = vmatpush2.msra.mxu0 0.0
    %1779 = vmatprep.subr.mxu0 0.0
    %1780 = vmatpush2.msra.mxu0 0.0
    %1781 = vmatprep.subr.mxu0 0.0
    %1782 = vmatpush2.msra.mxu0 0.0
    %1783 = vmatprep.subr.mxu0 0.0
    %1784 = vmatpush2.msra.mxu0 0.0
    %1785 = vmatprep.subr.mxu0 0.0
    %1786 = vmatpush2.msra.mxu0 0.0
    %1787 = vmatprep.mubr.f32.mxu0 0.0
    %1788 = vmatmul.mubr.f32.gmra.mxu0 %v1690
    %v1789 = vpop.f32.mrf.mxu0
    %v1790 = vadd.f32 0.0, %v1789
    %v1791 = vpop.f32.mrf.mxu0
    %v1792 = vadd.f32 0.0, %v1791
    %1793 = vdwg.mxu0
    %1794 = vmatprep.subr.mxu0 %v1689
    %1795 = vmatpush1.msra.mxu0 %v1688
    %1796 = vmatprep.subr.mxu0 %v1687
    %1797 = vmatpush1.msra.mxu0 %v1686
    %1798 = vmatprep.subr.mxu0 %v1685
    %1799 = vmatpush1.msra.mxu0 %v1684
    %1800 = vmatprep.subr.mxu0 %v1683
    %1801 = vmatpush1.msra.mxu0 %v1682
    %1802 = vmatprep.subr.mxu0 %v1681
    %1803 = vmatpush1.msra.mxu0 %v1680
    %1804 = vmatprep.subr.mxu0 %v1679
    %1805 = vmatpush1.msra.mxu0 %v1678
    %1806 = vmatprep.subr.mxu0 %v1677
    %1807 = vmatpush1.msra.mxu0 %v1676
    %1808 = vmatprep.subr.mxu0 %v1675
    %1809 = vmatpush1.msra.mxu0 %v1674
    %1810 = vmatprep.subr.mxu0 %v1673
    %1811 = vmatpush1.msra.mxu0 %v1672
    %1812 = vmatprep.subr.mxu0 %v1671
    %1813 = vmatpush1.msra.mxu0 %v1670
    %1814 = vmatprep.subr.mxu0 %v1669
    %1815 = vmatpush1.msra.mxu0 %v1668
    %1816 = vmatprep.subr.mxu0 %v1667
    %1817 = vmatpush1.msra.mxu0 %v1666
    %1818 = vmatprep.subr.mxu0 %v1665
    %1819 = vmatpush1.msra.mxu0 %v1664
    %1820 = vmatprep.subr.mxu0 %v1663
    %1821 = vmatpush1.msra.mxu0 %v1662
    %1822 = vmatprep.subr.mxu0 %v1661
    %1823 = vmatpush1.msra.mxu0 %v1660
    %1824 = vmatprep.subr.mxu0 %v1659
    %1825 = vmatpush1.msra.mxu0 %v1658
    %1826 = vmatprep.subr.mxu0 0.0
    %1827 = vmatpush2.msra.mxu0 0.0
    %1828 = vmatprep.subr.mxu0 0.0
    %1829 = vmatpush2.msra.mxu0 0.0
    %1830 = vmatprep.subr.mxu0 0.0
    %1831 = vmatpush2.msra.mxu0 0.0
    %1832 = vmatprep.subr.mxu0 0.0
    %1833 = vmatpush2.msra.mxu0 0.0
    %1834 = vmatprep.subr.mxu0 0.0
    %1835 = vmatpush2.msra.mxu0 0.0
    %1836 = vmatprep.subr.mxu0 0.0
    %1837 = vmatpush2.msra.mxu0 0.0
    %1838 = vmatprep.subr.mxu0 0.0
    %1839 = vmatpush2.msra.mxu0 0.0
    %1840 = vmatprep.subr.mxu0 0.0
    %1841 = vmatpush2.msra.mxu0 0.0
    %1842 = vmatprep.subr.mxu0 0.0
    %1843 = vmatpush2.msra.mxu0 0.0
    %1844 = vmatprep.subr.mxu0 0.0
    %1845 = vmatpush2.msra.mxu0 0.0
    %1846 = vmatprep.subr.mxu0 0.0
    %1847 = vmatpush2.msra.mxu0 0.0
    %1848 = vmatprep.subr.mxu0 0.0
    %1849 = vmatpush2.msra.mxu0 0.0
    %1850 = vmatprep.subr.mxu0 0.0
    %1851 = vmatpush2.msra.mxu0 0.0
    %1852 = vmatprep.subr.mxu0 0.0
    %1853 = vmatpush2.msra.mxu0 0.0
    %1854 = vmatprep.subr.mxu0 0.0
    %1855 = vmatpush2.msra.mxu0 0.0
    %1856 = vmatprep.subr.mxu0 0.0
    %1857 = vmatpush2.msra.mxu0 0.0
    %1858 = vmatprep.mubr.f32.mxu0 0.0
    %1859 = vmatmul.mubr.f32.gmra.mxu0 %v1657
    %v1860 = vpop.f32.mrf.mxu0
    %v1861 = vadd.f32 %v1790, %v1860
    %v1862 = vpop.f32.mrf.mxu0
    %v1863 = vadd.f32 %v1792, %v1862
    %1864 = vdwg.mxu0
    %v1865 = vld [vmem:[%s787] ss:$2 sm:$0x3]
    %v1866 = vld [vmem:[%s789] sm:$0xff]
    %v1867 = vld [vmem:[%s789 + $0x8] sm:$0xff]
    %v1868 = vld [vmem:[%s789 + $0x10] sm:$0xff]
    %v1869 = vld [vmem:[%s789 + $0x18] sm:$0xff]
    %v1870 = vld [vmem:[%s789 + $0x20] sm:$0xff]
    %v1871 = vld [vmem:[%s789 + $0x28] sm:$0xff]
    %v1872 = vld [vmem:[%s789 + $0x30] sm:$0xff]
    %v1873 = vld [vmem:[%s789 + $0x38] sm:$0xff]
    %v1874 = vld [vmem:[%s789 + $0x40] sm:$0xff]
    %v1875 = vld [vmem:[%s789 + $0x48] sm:$0xff]
    %v1876 = vld [vmem:[%s789 + $0x50] sm:$0xff]
    %v1877 = vld [vmem:[%s789 + $0x58] sm:$0xff]
    %v1878 = vld [vmem:[%s789 + $0x60] sm:$0xff]
    %v1879 = vld [vmem:[%s789 + $0x68] sm:$0xff]
    %v1880 = vld [vmem:[%s789 + $0x70] sm:$0xff]
    %v1881 = vld [vmem:[%s789 + $0x78] sm:$0xff]
    %v1882 = vld [vmem:[%s789 + $0x80] sm:$0xff]
    %v1883 = vld [vmem:[%s789 + $0x88] sm:$0xff]
    %v1884 = vld [vmem:[%s789 + $0x90] sm:$0xff]
    %v1885 = vld [vmem:[%s789 + $0x98] sm:$0xff]
    %v1886 = vld [vmem:[%s789 + $0xa0] sm:$0xff]
    %v1887 = vld [vmem:[%s789 + $0xa8] sm:$0xff]
    %v1888 = vld [vmem:[%s789 + $0xb0] sm:$0xff]
    %v1889 = vld [vmem:[%s789 + $0xb8] sm:$0xff]
    %v1890 = vld [vmem:[%s789 + $0xc0] sm:$0xff]
    %v1891 = vld [vmem:[%s789 + $0xc8] sm:$0xff]
    %v1892 = vld [vmem:[%s789 + $0xd0] sm:$0xff]
    %v1893 = vld [vmem:[%s789 + $0xd8] sm:$0xff]
    %v1894 = vld [vmem:[%s789 + $0xe0] sm:$0xff]
    %v1895 = vld [vmem:[%s789 + $0xe8] sm:$0xff]
    %v1896 = vld [vmem:[%s789 + $0xf0] sm:$0xff]
    %v1897 = vld [vmem:[%s789 + $0xf8] sm:$0xff]
    %1898 = vmatprep.subr.mxu0 %v1897
    %1899 = vmatpush1.msra.mxu0 %v1896
    %1900 = vmatprep.subr.mxu0 %v1895
    %1901 = vmatpush1.msra.mxu0 %v1894
    %1902 = vmatprep.subr.mxu0 %v1893
    %1903 = vmatpush1.msra.mxu0 %v1892
    %1904 = vmatprep.subr.mxu0 %v1891
    %1905 = vmatpush1.msra.mxu0 %v1890
    %1906 = vmatprep.subr.mxu0 %v1889
    %1907 = vmatpush1.msra.mxu0 %v1888
    %1908 = vmatprep.subr.mxu0 %v1887
    %1909 = vmatpush1.msra.mxu0 %v1886
    %1910 = vmatprep.subr.mxu0 %v1885
    %1911 = vmatpush1.msra.mxu0 %v1884
    %1912 = vmatprep.subr.mxu0 %v1883
    %1913 = vmatpush1.msra.mxu0 %v1882
    %1914 = vmatprep.subr.mxu0 %v1881
    %1915 = vmatpush1.msra.mxu0 %v1880
    %1916 = vmatprep.subr.mxu0 %v1879
    %1917 = vmatpush1.msra.mxu0 %v1878
    %1918 = vmatprep.subr.mxu0 %v1877
    %1919 = vmatpush1.msra.mxu0 %v1876
    %1920 = vmatprep.subr.mxu0 %v1875
    %1921 = vmatpush1.msra.mxu0 %v1874
    %1922 = vmatprep.subr.mxu0 %v1873
    %1923 = vmatpush1.msra.mxu0 %v1872
    %1924 = vmatprep.subr.mxu0 %v1871
    %1925 = vmatpush1.msra.mxu0 %v1870
    %1926 = vmatprep.subr.mxu0 %v1869
    %1927 = vmatpush1.msra.mxu0 %v1868
    %1928 = vmatprep.subr.mxu0 %v1867
    %1929 = vmatpush1.msra.mxu0 %v1866
    %1930 = vmatprep.subr.mxu0 0.0
    %1931 = vmatpush2.msra.mxu0 0.0
    %1932 = vmatprep.subr.mxu0 0.0
    %1933 = vmatpush2.msra.mxu0 0.0
    %1934 = vmatprep.subr.mxu0 0.0
    %1935 = vmatpush2.msra.mxu0 0.0
    %1936 = vmatprep.subr.mxu0 0.0
    %1937 = vmatpush2.msra.mxu0 0.0
    %1938 = vmatprep.subr.mxu0 0.0
    %1939 = vmatpush2.msra.mxu0 0.0
    %1940 = vmatprep.subr.mxu0 0.0
    %1941 = vmatpush2.msra.mxu0 0.0
    %1942 = vmatprep.subr.mxu0 0.0
    %1943 = vmatpush2.msra.mxu0 0.0
    %1944 = vmatprep.subr.mxu0 0.0
    %1945 = vmatpush2.msra.mxu0 0.0
    %1946 = vmatprep.subr.mxu0 0.0
    %1947 = vmatpush2.msra.mxu0 0.0
    %1948 = vmatprep.subr.mxu0 0.0
    %1949 = vmatpush2.msra.mxu0 0.0
    %1950 = vmatprep.subr.mxu0 0.0
    %1951 = vmatpush2.msra.mxu0 0.0
    %1952 = vmatprep.subr.mxu0 0.0
    %1953 = vmatpush2.msra.mxu0 0.0
    %1954 = vmatprep.subr.mxu0 0.0
    %1955 = vmatpush2.msra.mxu0 0.0
    %1956 = vmatprep.subr.mxu0 0.0
    %1957 = vmatpush2.msra.mxu0 0.0
    %1958 = vmatprep.subr.mxu0 0.0
    %1959 = vmatpush2.msra.mxu0 0.0
    %1960 = vmatprep.subr.mxu0 0.0
    %1961 = vmatpush2.msra.mxu0 0.0
    %1962 = vmatprep.mubr.f32.mxu0 0.0
    %1963 = vmatmul.mubr.f32.gmra.mxu0 %v1865
    %v1964 = vpop.f32.mrf.mxu0
    %v1965 = vadd.f32 0.0, %v1964
    %v1966 = vpop.f32.mrf.mxu0
    %v1967 = vadd.f32 0.0, %v1966
    %1968 = vdwg.mxu0
    %v1969 = vadd.f32 %v1861, %v1965
    %v1970 = vadd.f32 %v1863, %v1967
    %v1971 = vld [vmem:[%s6] sm:$0x3]
    %v1973 = vlaneseq
    %v1974 = vshrl.u32 %v1973, 7
    %v1975 = vsub.s32 0, %v1974
    %v1976 = vrot.slane %v1971, %v1975
    %v1977 = vlaneseq
    %v1978 = vshrl.u32 %v1977, 7
    %v1979 = vsub.s32 1, %v1978
    %v1980 = vrot.slane %v1971, %v1979
    %v1983 = vadd.f32 %v1969, %v1976
    %v1984 = vadd.f32 %v1970, %v1980
    %vm1985 = vcmp.gt.f32.partialorder %v1983, 0.0
    %vm1986 = vcmp.gt.f32.partialorder %v1984, 0.0
    %v1987 = vmul.f32 %v1983, 0.2
    %v1988 = vmul.f32 %v1984, 0.2
    %v1989 = vsel %vm1985, %v1983, %v1987
    %v1990 = vsel %vm1986, %v1984, %v1988
    %v1991 = vld [vmem:[%s7] sm:$0xff]
    %v1992 = vld [vmem:[%s7 + $0x8] sm:$0xff]
    %v1993 = vld [vmem:[%s7 + $0x10] sm:$0xff]
    %v1994 = vld [vmem:[%s7 + $0x18] sm:$0xff]
    %v1995 = vld [vmem:[%s7 + $0x20] sm:$0xff]
    %v1996 = vld [vmem:[%s7 + $0x28] sm:$0xff]
    %v1997 = vld [vmem:[%s7 + $0x30] sm:$0xff]
    %v1998 = vld [vmem:[%s7 + $0x38] sm:$0xff]
    %v1999 = vld [vmem:[%s7 + $0x40] sm:$0xff]
    %v2000 = vld [vmem:[%s7 + $0x48] sm:$0xff]
    %v2001 = vld [vmem:[%s7 + $0x50] sm:$0xff]
    %v2002 = vld [vmem:[%s7 + $0x58] sm:$0xff]
    %v2003 = vld [vmem:[%s7 + $0x60] sm:$0xff]
    %v2004 = vld [vmem:[%s7 + $0x68] sm:$0xff]
    %v2005 = vld [vmem:[%s7 + $0x70] sm:$0xff]
    %v2006 = vld [vmem:[%s7 + $0x78] sm:$0xff]
    %v2007 = vld [vmem:[%s7 + $0x80] sm:$0xff]
    %v2008 = vld [vmem:[%s7 + $0x88] sm:$0xff]
    %v2009 = vld [vmem:[%s7 + $0x90] sm:$0xff]
    %v2010 = vld [vmem:[%s7 + $0x98] sm:$0xff]
    %v2011 = vld [vmem:[%s7 + $0xa0] sm:$0xff]
    %v2012 = vld [vmem:[%s7 + $0xa8] sm:$0xff]
    %v2013 = vld [vmem:[%s7 + $0xb0] sm:$0xff]
    %v2014 = vld [vmem:[%s7 + $0xb8] sm:$0xff]
    %v2015 = vld [vmem:[%s7 + $0xc0] sm:$0xff]
    %v2016 = vld [vmem:[%s7 + $0xc8] sm:$0xff]
    %v2017 = vld [vmem:[%s7 + $0xd0] sm:$0xff]
    %v2018 = vld [vmem:[%s7 + $0xd8] sm:$0xff]
    %v2019 = vld [vmem:[%s7 + $0xe0] sm:$0xff]
    %v2020 = vld [vmem:[%s7 + $0xe8] sm:$0xff]
    %v2021 = vld [vmem:[%s7 + $0xf0] sm:$0xff]
    %v2022 = vld [vmem:[%s7 + $0xf8] sm:$0xff]
    %v2023 = vld [vmem:[%s947] sm:$0xff]
    %v2024 = vld [vmem:[%s947 + $0x8] sm:$0xff]
    %v2025 = vld [vmem:[%s947 + $0x10] sm:$0xff]
    %v2026 = vld [vmem:[%s947 + $0x18] sm:$0xff]
    %v2027 = vld [vmem:[%s947 + $0x20] sm:$0xff]
    %v2028 = vld [vmem:[%s947 + $0x28] sm:$0xff]
    %v2029 = vld [vmem:[%s947 + $0x30] sm:$0xff]
    %v2030 = vld [vmem:[%s947 + $0x38] sm:$0xff]
    %v2031 = vld [vmem:[%s947 + $0x40] sm:$0xff]
    %v2032 = vld [vmem:[%s947 + $0x48] sm:$0xff]
    %v2033 = vld [vmem:[%s947 + $0x50] sm:$0xff]
    %v2034 = vld [vmem:[%s947 + $0x58] sm:$0xff]
    %v2035 = vld [vmem:[%s947 + $0x60] sm:$0xff]
    %v2036 = vld [vmem:[%s947 + $0x68] sm:$0xff]
    %v2037 = vld [vmem:[%s947 + $0x70] sm:$0xff]
    %v2038 = vld [vmem:[%s947 + $0x78] sm:$0xff]
    %v2039 = vld [vmem:[%s947 + $0x80] sm:$0xff]
    %v2040 = vld [vmem:[%s947 + $0x88] sm:$0xff]
    %v2041 = vld [vmem:[%s947 + $0x90] sm:$0xff]
    %v2042 = vld [vmem:[%s947 + $0x98] sm:$0xff]
    %v2043 = vld [vmem:[%s947 + $0xa0] sm:$0xff]
    %v2044 = vld [vmem:[%s947 + $0xa8] sm:$0xff]
    %v2045 = vld [vmem:[%s947 + $0xb0] sm:$0xff]
    %v2046 = vld [vmem:[%s947 + $0xb8] sm:$0xff]
    %v2047 = vld [vmem:[%s947 + $0xc0] sm:$0xff]
    %v2048 = vld [vmem:[%s947 + $0xc8] sm:$0xff]
    %v2049 = vld [vmem:[%s947 + $0xd0] sm:$0xff]
    %v2050 = vld [vmem:[%s947 + $0xd8] sm:$0xff]
    %v2051 = vld [vmem:[%s947 + $0xe0] sm:$0xff]
    %v2052 = vld [vmem:[%s947 + $0xe8] sm:$0xff]
    %v2053 = vld [vmem:[%s947 + $0xf0] sm:$0xff]
    %v2054 = vld [vmem:[%s947 + $0xf8] sm:$0xff]
    %v2057 = vrot.slane %v1989, 1
    %v2058 = vrot.slane %v1990, 1
    %2061 = vmatprep.subr.mxu0 0.0
    %2062 = vmatpush1.msra.mxu0 %v2038
    %2063 = vmatprep.subr.mxu0 0.0
    %2064 = vmatpush1.msra.mxu0 %v2037
    %2065 = vmatprep.subr.mxu0 0.0
    %2066 = vmatpush1.msra.mxu0 %v2036
    %2067 = vmatprep.subr.mxu0 0.0
    %2068 = vmatpush1.msra.mxu0 %v2035
    %2069 = vmatprep.subr.mxu0 0.0
    %2070 = vmatpush1.msra.mxu0 %v2034
    %2071 = vmatprep.subr.mxu0 0.0
    %2072 = vmatpush1.msra.mxu0 %v2033
    %2073 = vmatprep.subr.mxu0 0.0
    %2074 = vmatpush1.msra.mxu0 %v2032
    %2075 = vmatprep.subr.mxu0 0.0
    %2076 = vmatpush1.msra.mxu0 %v2031
    %2077 = vmatprep.subr.mxu0 0.0
    %2078 = vmatpush1.msra.mxu0 %v2030
    %2079 = vmatprep.subr.mxu0 0.0
    %2080 = vmatpush1.msra.mxu0 %v2029
    %2081 = vmatprep.subr.mxu0 0.0
    %2082 = vmatpush1.msra.mxu0 %v2028
    %2083 = vmatprep.subr.mxu0 0.0
    %2084 = vmatpush1.msra.mxu0 %v2027
    %2085 = vmatprep.subr.mxu0 0.0
    %2086 = vmatpush1.msra.mxu0 %v2026
    %2087 = vmatprep.subr.mxu0 0.0
    %2088 = vmatpush1.msra.mxu0 %v2025
    %2089 = vmatprep.subr.mxu0 0.0
    %2090 = vmatpush1.msra.mxu0 %v2024
    %2091 = vmatprep.subr.mxu0 0.0
    %2092 = vmatpush1.msra.mxu0 %v2023
    %2093 = vmatprep.subr.mxu0 0.0
    %2094 = vmatpush2.msra.mxu0 %v2054
    %2095 = vmatprep.subr.mxu0 0.0
    %2096 = vmatpush2.msra.mxu0 %v2053
    %2097 = vmatprep.subr.mxu0 0.0
    %2098 = vmatpush2.msra.mxu0 %v2052
    %2099 = vmatprep.subr.mxu0 0.0
    %2100 = vmatpush2.msra.mxu0 %v2051
    %2101 = vmatprep.subr.mxu0 0.0
    %2102 = vmatpush2.msra.mxu0 %v2050
    %2103 = vmatprep.subr.mxu0 0.0
    %2104 = vmatpush2.msra.mxu0 %v2049
    %2105 = vmatprep.subr.mxu0 0.0
    %2106 = vmatpush2.msra.mxu0 %v2048
    %2107 = vmatprep.subr.mxu0 0.0
    %2108 = vmatpush2.msra.mxu0 %v2047
    %2109 = vmatprep.subr.mxu0 0.0
    %2110 = vmatpush2.msra.mxu0 %v2046
    %2111 = vmatprep.subr.mxu0 0.0
    %2112 = vmatpush2.msra.mxu0 %v2045
    %2113 = vmatprep.subr.mxu0 0.0
    %2114 = vmatpush2.msra.mxu0 %v2044
    %2115 = vmatprep.subr.mxu0 0.0
    %2116 = vmatpush2.msra.mxu0 %v2043
    %2117 = vmatprep.subr.mxu0 0.0
    %2118 = vmatpush2.msra.mxu0 %v2042
    %2119 = vmatprep.subr.mxu0 0.0
    %2120 = vmatpush2.msra.mxu0 %v2041
    %2121 = vmatprep.subr.mxu0 0.0
    %2122 = vmatpush2.msra.mxu0 %v2040
    %2123 = vmatprep.subr.mxu0 0.0
    %2124 = vmatpush2.msra.mxu0 %v2039
    %2125 = vmatprep.mubr.f32.mxu0 %v2058
    %2126 = vmatmul.mubr.f32.gmra.mxu0 %v2057
    %v2127 = vpop.f32.mrf.mxu0
    %v2128 = vadd.f32 0.0, %v2127
    %v2129 = vpop.f32.mrf.mxu0
    %2130 = vdwg.mxu0
    %2131 = vmatprep.subr.mxu0 0.0
    %2132 = vmatpush1.msra.mxu0 %v2006
    %2133 = vmatprep.subr.mxu0 0.0
    %2134 = vmatpush1.msra.mxu0 %v2005
    %2135 = vmatprep.subr.mxu0 0.0
    %2136 = vmatpush1.msra.mxu0 %v2004
    %2137 = vmatprep.subr.mxu0 0.0
    %2138 = vmatpush1.msra.mxu0 %v2003
    %2139 = vmatprep.subr.mxu0 0.0
    %2140 = vmatpush1.msra.mxu0 %v2002
    %2141 = vmatprep.subr.mxu0 0.0
    %2142 = vmatpush1.msra.mxu0 %v2001
    %2143 = vmatprep.subr.mxu0 0.0
    %2144 = vmatpush1.msra.mxu0 %v2000
    %2145 = vmatprep.subr.mxu0 0.0
    %2146 = vmatpush1.msra.mxu0 %v1999
    %2147 = vmatprep.subr.mxu0 0.0
    %2148 = vmatpush1.msra.mxu0 %v1998
    %2149 = vmatprep.subr.mxu0 0.0
    %2150 = vmatpush1.msra.mxu0 %v1997
    %2151 = vmatprep.subr.mxu0 0.0
    %2152 = vmatpush1.msra.mxu0 %v1996
    %2153 = vmatprep.subr.mxu0 0.0
    %2154 = vmatpush1.msra.mxu0 %v1995
    %2155 = vmatprep.subr.mxu0 0.0
    %2156 = vmatpush1.msra.mxu0 %v1994
    %2157 = vmatprep.subr.mxu0 0.0
    %2158 = vmatpush1.msra.mxu0 %v1993
    %2159 = vmatprep.subr.mxu0 0.0
    %2160 = vmatpush1.msra.mxu0 %v1992
    %2161 = vmatprep.subr.mxu0 0.0
    %2162 = vmatpush1.msra.mxu0 %v1991
    %2163 = vmatprep.subr.mxu0 0.0
    %2164 = vmatpush2.msra.mxu0 %v2022
    %2165 = vmatprep.subr.mxu0 0.0
    %2166 = vmatpush2.msra.mxu0 %v2021
    %2167 = vmatprep.subr.mxu0 0.0
    %2168 = vmatpush2.msra.mxu0 %v2020
    %2169 = vmatprep.subr.mxu0 0.0
    %2170 = vmatpush2.msra.mxu0 %v2019
    %2171 = vmatprep.subr.mxu0 0.0
    %2172 = vmatpush2.msra.mxu0 %v2018
    %2173 = vmatprep.subr.mxu0 0.0
    %2174 = vmatpush2.msra.mxu0 %v2017
    %2175 = vmatprep.subr.mxu0 0.0
    %2176 = vmatpush2.msra.mxu0 %v2016
    %2177 = vmatprep.subr.mxu0 0.0
    %2178 = vmatpush2.msra.mxu0 %v2015
    %2179 = vmatprep.subr.mxu0 0.0
    %2180 = vmatpush2.msra.mxu0 %v2014
    %2181 = vmatprep.subr.mxu0 0.0
    %2182 = vmatpush2.msra.mxu0 %v2013
    %2183 = vmatprep.subr.mxu0 0.0
    %2184 = vmatpush2.msra.mxu0 %v2012
    %2185 = vmatprep.subr.mxu0 0.0
    %2186 = vmatpush2.msra.mxu0 %v2011
    %2187 = vmatprep.subr.mxu0 0.0
    %2188 = vmatpush2.msra.mxu0 %v2010
    %2189 = vmatprep.subr.mxu0 0.0
    %2190 = vmatpush2.msra.mxu0 %v2009
    %2191 = vmatprep.subr.mxu0 0.0
    %2192 = vmatpush2.msra.mxu0 %v2008
    %2193 = vmatprep.subr.mxu0 0.0
    %2194 = vmatpush2.msra.mxu0 %v2007
    %2195 = vmatprep.mubr.f32.mxu0 %v1990
    %2196 = vmatmul.mubr.f32.gmra.mxu0 %v1989
    %v2197 = vpop.f32.mrf.mxu0
    %v2198 = vadd.f32 %v2128, %v2197
    %v2199 = vpop.f32.mrf.mxu0
    %2200 = vdwg.mxu0
    %v2201 = vld [vmem:[%s8] sm:$0x1]
    %v2202 = vadd.f32 %v2198, %v2201
    %vm2203 = vcmp.gt.f32.partialorder %v2202, 0.0
    %v2204 = vmul.f32 %v2202, 0.2
    %v2205 = vsel %vm2203, %v2202, %v2204
    %v2206 = vld [vmem:[%s9] sm:$0x1]
    %v2207 = vmul.f32 %v2205, %v2206
    %v2208 = vsel %vm1133, %v2207, 0.0
    %2209 = vadd.xlane.f32.xlu0 %v2208
    %v2210 = vpop.xlane.xlu0 %2209
    %s2211 = sld [smem:[#allocation5]]
    %v2212 = vstv %s2211
    %v2213 = vadd.f32 %v2210, %v2212
    %v2214 = vxor.u32 %v2213, 2147483648
    %v2215 = vmul.f32 %v2214, 1.442695
    %v2216 = vpow.pop %v2215
    %v2217 = vadd.f32 %v2216, 1.0
    %v2218 = vrcp.pop %v2217
    %v2219 = vmul.f32 1.0, %v2218
    %2220 = vst.msk [vmem:[%s11 + $0x1] sm:$0x1] %vm1146, %v2219
    // Predicated region
    $region50: #{trade_discriminator_forward.1} parent=1 // pred_check
      _
    $region51: #{trade_discriminator_forward.1} parent=1 // pred_check_branch
      %2222 = sbr.rel (0) target = $region53
    $region52: #{trade_discriminator_forward.1} parent=1 // pred_region
      _
    $region53: #{trade_discriminator_forward.1} parent=1 // pred_fallthru
      _
    // Predicated region
    $region54: #{trade_discriminator_forward.1} parent=1 // pred_check
      _
    $region55: #{trade_discriminator_forward.1} parent=1 // pred_check_branch
      %2224 = sbr.rel (0) target = $region57
    $region56: #{trade_discriminator_forward.1} parent=1 // pred_region
      _
    $region57: #{trade_discriminator_forward.1} parent=1 // pred_fallthru
      _
    %2225 = vsyncpa [#allocation7], 1

</llo_original>
